<compile_context>
chip_gen: v7x
topology: tpu7x:2x2x1
jax: 0.10.0
libtpu: 0.0.40
codegen_flags: <defaults>
</compile_context>

<pallas_src>
import jax
import jax.numpy as jnp
import numpy as np
from jax.experimental import pallas as pl
from jax.experimental.pallas import tpu as pltpu


def lstm_mlp_kernel(x_ref, wih_ref, whh_ref, bias_ref,
                    w1_ref, b1_ref, w2t_ref, b2_ref, out_ref):
    """One grid step processes one block of BB independent sequences.

    x_ref:    (1, T*BB, IN)  time-major within the block: row index = t*BB + b
    wih_ref:  (IN, 4H)       input->gate weights, columns permuted to [i|f|o|g]
    whh_ref:  (H, 4H)        hidden->gate weights, same column order
    bias_ref: (1, 4H)        bias_ih + bias_hh, same column order
    w1_ref:   (H, H1)        head Linear #1 (pre-transposed)
    b1_ref:   (1, H1)
    w2t_ref:  (1, H1)        head Linear #2 weight laid out as a row
    b2_ref:   (1, 1)         scalar bias, in SMEM
    out_ref:  (BB, 1)        y[-1] for each sequence in the block
    """
    BB = out_ref.shape[0]
    TB = x_ref.shape[1]
    T = TB // BB
    H = whh_ref.shape[0]

    whh = whh_ref[...]
    w1 = w1_ref[...]
    b1 = b1_ref[...]
    w2t = w2t_ref[...]

    # Hoisted input projection + bias: one matmul for all T timesteps of all
    # BB sequences; only the recurrent h @ whh matmul remains on the serial
    # h_t -> h_{t+1} critical path.
    xp = (jnp.dot(x_ref[0], wih_ref[...], preferred_element_type=jnp.float32)
          + bias_ref[...])                                    # (T*BB, 4H)

    h = jnp.zeros((BB, H), jnp.float32)
    c = jnp.zeros((BB, H), jnp.float32)

    # Fully (statically) unrolled recurrence: T is small and compile-time
    # static, so every slice offset is a constant and the LLO scheduler sees
    # the whole chain.
    for t in range(T):
        g = xp[t * BB:(t + 1) * BB, :] + jnp.dot(
            h, whh, preferred_element_type=jnp.float32)       # (BB, 4H)
        s = jax.nn.sigmoid(g[:, :3 * H])                      # packed [i|f|o]
        i_g = s[:, 0 * H:1 * H]
        f_g = s[:, 1 * H:2 * H]
        o_g = s[:, 2 * H:3 * H]
        g_g = jnp.tanh(g[:, 3 * H:4 * H])                     # candidate gate
        c = f_g * c + i_g * g_g
        h = o_g * jnp.tanh(c)

    # Head on the last timestep only (== x[-1] of the PyTorch module):
    # Tanh -> Linear(H, H1) -> LeakyReLU(0.01) -> Linear(H1, 1).
    z = jnp.tanh(h)                                           # (BB, H)
    z = jnp.dot(z, w1, preferred_element_type=jnp.float32) + b1
    z = jnp.where(z > 0, z, 0.01 * z)                         # LeakyReLU(0.01)
    y = jnp.sum(z * w2t, axis=-1, keepdims=True) + b2_ref[0, 0]   # (BB, 1)
    out_ref[...] = y


def lstm_forward(x, wih, whh, bih, bhh, w1, b1, w2, b2, *, block_b=8):
    """Batched forward over independent sequences.

    x: (B, T, IN) float32 (or (T, IN) for a single sequence, like the module).
    Returns (B, 1): the PyTorch module's x[-1] for each sequence.
    """
    x = jnp.asarray(x, jnp.float32)
    if x.ndim == 2:                       # single sequence, module-style input
        x = x[None]
    B, T, IN = x.shape
    H = whh.shape[1]
    H1 = w1.shape[0]
    assert block_b % 8 == 0, "block_b must be a multiple of 8 (sublane tiling)"

    # Pad batch up to a multiple of the block size with zero sequences.
    B_pad = ((B + block_b - 1) // block_b) * block_b
    if B_pad != B:
        x = jnp.concatenate(
            [x, jnp.zeros((B_pad - B, T, IN), jnp.float32)], axis=0)
    nb = B_pad // block_b

    # Per-block, time-major layout: block i, row t*block_b + b  <->  sequence
    # i*block_b + b at timestep t.  Gives each grid step a contiguous 2-D slab
    # so the hoisted projection is a single plain matmul (no in-kernel reshape).
    x_r = (x.reshape(nb, block_b, T, IN)
             .transpose(0, 2, 1, 3)
             .reshape(nb, T * block_b, IN))

    # Permute PyTorch gate order [i, f, g, o] -> [i, f, o, g] so the three
    # sigmoid gates are contiguous (one sigmoid + one tanh per step).
    perm = jnp.concatenate([jnp.arange(0, H), jnp.arange(H, 2 * H),
                            jnp.arange(3 * H, 4 * H), jnp.arange(2 * H, 3 * H)])

    args = (
        x_r,                                                      # (nb, T*BB, IN)
        wih.T.astype(jnp.float32)[:, perm],                       # (IN, 4H)
        whh.T.astype(jnp.float32)[:, perm],                       # (H, 4H)
        (bih + bhh).astype(jnp.float32)[perm][None, :],           # (1, 4H)
        w1.T.astype(jnp.float32),                                 # (H, H1)
        b1.astype(jnp.float32)[None, :],                          # (1, H1)
        w2.astype(jnp.float32).reshape(1, -1),                    # (1, H1)
        b2.astype(jnp.float32).reshape(1, 1),                     # (1, 1) SMEM
    )

    out = pl.pallas_call(
        lstm_mlp_kernel,
        out_shape=jax.ShapeDtypeStruct((B_pad, 1), jnp.float32),
        grid=(nb,),
        in_specs=[
            pl.BlockSpec((1, T * block_b, IN), lambda i: (i, 0, 0)),
            pl.BlockSpec((IN, 4 * H), lambda i: (0, 0)),
            pl.BlockSpec((H, 4 * H), lambda i: (0, 0)),
            pl.BlockSpec((1, 4 * H), lambda i: (0, 0)),
            pl.BlockSpec((H, H1), lambda i: (0, 0)),
            pl.BlockSpec((1, H1), lambda i: (0, 0)),
            pl.BlockSpec((1, H1), lambda i: (0, 0)),
            pl.BlockSpec((1, 1), lambda i: (0, 0),
                         memory_space=pltpu.MemorySpace.SMEM),
        ],
        out_specs=pl.BlockSpec((block_b, 1), lambda i: (i, 0)),
        compiler_params=pltpu.CompilerParams(
            dimension_semantics=("parallel",)),   # 2nd TensorCore on v7x
    )(*args)
    # TODO(synk): bf16 weight/activation variant for v6e/v7x (keep f32 accum);
    # skipped here to preserve f32-exact parity with the PyTorch reference.
    return out[:B]


def _sigmoid(v):
    return 1.0 / (1.0 + np.exp(-v))


def reference_forward(x, wih, whh, bih, bhh, w1, b1, w2, b2):
    """Pure-numpy replica of the PyTorch forward for ONE sequence (batch=1)."""
    x = np.asarray(x, np.float32)
    wih, whh = np.asarray(wih), np.asarray(whh)
    bih, bhh = np.asarray(bih), np.asarray(bhh)
    w1, b1, w2, b2 = np.asarray(w1), np.asarray(b1), np.asarray(w2), np.asarray(b2)
    H = whh.shape[1]
    h = np.zeros((1, H), np.float32)
    c = np.zeros((1, H), np.float32)
    hs = []
    for t in range(x.shape[0]):
        g = x[t:t + 1] @ wih.T + h @ whh.T + bih + bhh
        i = _sigmoid(g[:, 0 * H:1 * H])
        f = _sigmoid(g[:, 1 * H:2 * H])
        gg = np.tanh(g[:, 2 * H:3 * H])
        o = _sigmoid(g[:, 3 * H:4 * H])
        c = f * c + i * gg
        h = o * np.tanh(c)
        hs.append(h)
    hs = np.concatenate(hs, axis=0)                       # (T, H) == Flatten
    z = np.tanh(hs) @ w1.T + b1
    z = np.where(z > 0, z, 0.01 * z)
    y = z @ w2.T + b2                                     # (T, 1)
    return y[-1]                                          # (1,)


if __name__ == "__main__":
    # Small shapes consistent with the module defaults:
    # input_size=4, hidden_layer_sizes=[16, 8], output_size=1, seq len 8,
    # batched over 16 independent sequences (2 grid blocks of 8).
    T, IN = 8, 4
    H, H1, OUT = 16, 8, 1
    B, BB = 16, 8

    key = jax.random.PRNGKey(0)
    ks = jax.random.split(key, 9)
    k_lstm = 1.0 / np.sqrt(H)
    k_l1 = 1.0 / np.sqrt(H)
    k_l2 = 1.0 / np.sqrt(H1)

    wih = jax.random.uniform(ks[0], (4 * H, IN), jnp.float32, -k_lstm, k_lstm)
    whh = jax.random.uniform(ks[1], (4 * H, H), jnp.float32, -k_lstm, k_lstm)
    bih = jax.random.uniform(ks[2], (4 * H,), jnp.float32, -k_lstm, k_lstm)
    bhh = jax.random.uniform(ks[3], (4 * H,), jnp.float32, -k_lstm, k_lstm)
    w1 = jax.random.uniform(ks[4], (H1, H), jnp.float32, -k_l1, k_l1)
    b1 = jax.random.uniform(ks[5], (H1,), jnp.float32, -k_l1, k_l1)
    w2 = jax.random.uniform(ks[6], (OUT, H1), jnp.float32, -k_l2, k_l2)
    b2 = jax.random.uniform(ks[7], (OUT,), jnp.float32, -k_l2, k_l2)

    x = jax.random.normal(ks[8], (B, T, IN), jnp.float32)

    y = lstm_forward(x, wih, whh, bih, bhh, w1, b1, w2, b2, block_b=BB)
    y = jax.block_until_ready(y)

    x_np = np.asarray(x)
    y_ref = np.stack(
        [reference_forward(x_np[b], wih, whh, bih, bhh, w1, b1, w2, b2)
         for b in range(B)], axis=0)                      # (B, 1)

    np.testing.assert_allclose(np.asarray(y), y_ref, rtol=1e-5, atol=1e-5)
    print("KERNEL_OK")
</pallas_src>

<mosaic_0001>
module attributes {stable_mosaic.version = 11 : i64} {
  func.func @lstm_mlp_kernel(%arg0: i32, %arg1: memref<1x64x4xf32, #tpu.memory_space<vmem>>, %arg2: memref<4x64xf32, #tpu.memory_space<vmem>>, %arg3: memref<16x64xf32, #tpu.memory_space<vmem>>, %arg4: memref<1x64xf32, #tpu.memory_space<vmem>>, %arg5: memref<16x8xf32, #tpu.memory_space<vmem>>, %arg6: memref<1x8xf32, #tpu.memory_space<vmem>>, %arg7: memref<1x8xf32, #tpu.memory_space<vmem>>, %arg8: memref<1x1xf32, #tpu.memory_space<smem>>, %arg9: memref<8x1xf32, #tpu.memory_space<vmem>>) attributes {dimension_semantics = [#tpu.dimension_semantics<parallel>], iteration_bounds = array<i64: 2>, scalar_prefetch = 0 : i64, scratch_operands = 0 : i64, tpu.core_type = #tpu.core_type<tc>, window_params = [{transform_indices = @transform_0, window_bounds = array<i64: 1, 64, 4>}, {pipeline_mode = #tpu.pipeline_mode<synchronous>, transform_indices = @transform_1, window_bounds = array<i64: 4, 64>}, {pipeline_mode = #tpu.pipeline_mode<synchronous>, transform_indices = @transform_2, window_bounds = array<i64: 16, 64>}, {pipeline_mode = #tpu.pipeline_mode<synchronous>, transform_indices = @transform_3, window_bounds = array<i64: 1, 64>}, {pipeline_mode = #tpu.pipeline_mode<synchronous>, transform_indices = @transform_4, window_bounds = array<i64: 16, 8>}, {pipeline_mode = #tpu.pipeline_mode<synchronous>, transform_indices = @transform_5, window_bounds = array<i64: 1, 8>}, {pipeline_mode = #tpu.pipeline_mode<synchronous>, transform_indices = @transform_6, window_bounds = array<i64: 1, 8>}, {transform_indices = @transform_7, window_bounds = array<i64: 1, 1>}, {transform_indices = @transform_8, window_bounds = array<i64: 8, 1>}]} {
    %c0 = arith.constant 0 : index
    %c0_0 = arith.constant 0 : index
    %0 = vector.load %arg3[%c0, %c0_0] : memref<16x64xf32, #tpu.memory_space<vmem>>, vector<16x64xf32>
    %c0_1 = arith.constant 0 : index
    %c0_2 = arith.constant 0 : index
    %1 = vector.load %arg5[%c0_1, %c0_2] : memref<16x8xf32, #tpu.memory_space<vmem>>, vector<16x8xf32>
    %c0_3 = arith.constant 0 : index
    %c0_4 = arith.constant 0 : index
    %2 = vector.load %arg6[%c0_3, %c0_4] : memref<1x8xf32, #tpu.memory_space<vmem>>, vector<1x8xf32>
    %c0_5 = arith.constant 0 : index
    %c0_6 = arith.constant 0 : index
    %3 = vector.load %arg7[%c0_5, %c0_6] : memref<1x8xf32, #tpu.memory_space<vmem>>, vector<1x8xf32>
    %c0_7 = arith.constant 0 : index
    %c0_8 = arith.constant 0 : index
    %c0_9 = arith.constant 0 : index
    %4 = vector.load %arg1[%c0_7, %c0_8, %c0_9] : memref<1x64x4xf32, #tpu.memory_space<vmem>>, vector<1x64x4xf32>
    %5 = vector.shape_cast %4 : vector<1x64x4xf32> to vector<64x4xf32>
    %c0_10 = arith.constant 0 : index
    %c0_11 = arith.constant 0 : index
    %6 = vector.load %arg2[%c0_10, %c0_11] : memref<4x64xf32, #tpu.memory_space<vmem>>, vector<4x64xf32>
    %cst = arith.constant dense<0.000000e+00> : vector<64x64xf32>
    %7 = tpu.matmul %5, %6, %cst {dimension_numbers = #tpu.dot_dimension_numbers<[1], [0], [0], [1], [0, 0, 1, 1], [], []>} : vector<64x4xf32>, vector<4x64xf32>, vector<64x64xf32> -> vector<64x64xf32>
    %c0_12 = arith.constant 0 : index
    %c0_13 = arith.constant 0 : index
    %8 = vector.load %arg4[%c0_12, %c0_13] : memref<1x64xf32, #tpu.memory_space<vmem>>, vector<1x64xf32>
    %9 = vector.broadcast %8 : vector<1x64xf32> to vector<64x64xf32>
    %10 = arith.addf %7, %9 : vector<64x64xf32>
    %cst_14 = arith.constant 0.000000e+00 : f32
    %11 = vector.broadcast %cst_14 : f32 to vector<8x16xf32>
    %cst_15 = arith.constant 0.000000e+00 : f32
    %12 = vector.broadcast %cst_15 : f32 to vector<8x16xf32>
    %13 = vector.extract_strided_slice %10 {offsets = [0, 0], sizes = [8, 64], strides = [1, 1]} : vector<64x64xf32> to vector<8x64xf32>
    %cst_16 = arith.constant dense<0.000000e+00> : vector<8x64xf32>
    %14 = tpu.matmul %11, %0, %cst_16 {dimension_numbers = #tpu.dot_dimension_numbers<[1], [0], [0], [1], [0, 0, 1, 1], [], []>} : vector<8x16xf32>, vector<16x64xf32>, vector<8x64xf32> -> vector<8x64xf32>
    %15 = arith.addf %13, %14 : vector<8x64xf32>
    %16 = vector.extract_strided_slice %15 {offsets = [0, 0], sizes = [8, 48], strides = [1, 1]} : vector<8x64xf32> to vector<8x48xf32>
    %17 = arith.negf %16 : vector<8x48xf32>
    %18 = math.exp %17 : vector<8x48xf32>
    %cst_17 = arith.constant 1.000000e+00 : f32
    %19 = vector.broadcast %cst_17 : f32 to vector<8x48xf32>
    %20 = arith.addf %19, %18 : vector<8x48xf32>
    %21 = arith.divf %19, %20 : vector<8x48xf32>
    %22 = vector.extract_strided_slice %21 {offsets = [0, 0], sizes = [8, 16], strides = [1, 1]} : vector<8x48xf32> to vector<8x16xf32>
    %23 = vector.extract_strided_slice %21 {offsets = [0, 16], sizes = [8, 16], strides = [1, 1]} : vector<8x48xf32> to vector<8x16xf32>
    %24 = vector.extract_strided_slice %21 {offsets = [0, 32], sizes = [8, 16], strides = [1, 1]} : vector<8x48xf32> to vector<8x16xf32>
    %25 = vector.extract_strided_slice %15 {offsets = [0, 48], sizes = [8, 16], strides = [1, 1]} : vector<8x64xf32> to vector<8x16xf32>
    %26 = math.tanh %25 : vector<8x16xf32>
    %27 = arith.mulf %23, %12 : vector<8x16xf32>
    %28 = arith.mulf %22, %26 : vector<8x16xf32>
    %29 = arith.addf %27, %28 : vector<8x16xf32>
    %30 = math.tanh %29 : vector<8x16xf32>
    %31 = arith.mulf %24, %30 : vector<8x16xf32>
    %32 = vector.extract_strided_slice %10 {offsets = [8, 0], sizes = [8, 64], strides = [1, 1]} : vector<64x64xf32> to vector<8x64xf32>
    %cst_18 = arith.constant dense<0.000000e+00> : vector<8x64xf32>
    %33 = tpu.matmul %31, %0, %cst_18 {dimension_numbers = #tpu.dot_dimension_numbers<[1], [0], [0], [1], [0, 0, 1, 1], [], []>} : vector<8x16xf32>, vector<16x64xf32>, vector<8x64xf32> -> vector<8x64xf32>
    %34 = arith.addf %32, %33 : vector<8x64xf32>
    %35 = vector.extract_strided_slice %34 {offsets = [0, 0], sizes = [8, 48], strides = [1, 1]} : vector<8x64xf32> to vector<8x48xf32>
    %36 = arith.negf %35 : vector<8x48xf32>
    %37 = math.exp %36 : vector<8x48xf32>
    %cst_19 = arith.constant 1.000000e+00 : f32
    %38 = vector.broadcast %cst_19 : f32 to vector<8x48xf32>
    %39 = arith.addf %38, %37 : vector<8x48xf32>
    %40 = arith.divf %38, %39 : vector<8x48xf32>
    %41 = vector.extract_strided_slice %40 {offsets = [0, 0], sizes = [8, 16], strides = [1, 1]} : vector<8x48xf32> to vector<8x16xf32>
    %42 = vector.extract_strided_slice %40 {offsets = [0, 16], sizes = [8, 16], strides = [1, 1]} : vector<8x48xf32> to vector<8x16xf32>
    %43 = vector.extract_strided_slice %40 {offsets = [0, 32], sizes = [8, 16], strides = [1, 1]} : vector<8x48xf32> to vector<8x16xf32>
    %44 = vector.extract_strided_slice %34 {offsets = [0, 48], sizes = [8, 16], strides = [1, 1]} : vector<8x64xf32> to vector<8x16xf32>
    %45 = math.tanh %44 : vector<8x16xf32>
    %46 = arith.mulf %42, %29 : vector<8x16xf32>
    %47 = arith.mulf %41, %45 : vector<8x16xf32>
    %48 = arith.addf %46, %47 : vector<8x16xf32>
    %49 = math.tanh %48 : vector<8x16xf32>
    %50 = arith.mulf %43, %49 : vector<8x16xf32>
    %51 = vector.extract_strided_slice %10 {offsets = [16, 0], sizes = [8, 64], strides = [1, 1]} : vector<64x64xf32> to vector<8x64xf32>
    %cst_20 = arith.constant dense<0.000000e+00> : vector<8x64xf32>
    %52 = tpu.matmul %50, %0, %cst_20 {dimension_numbers = #tpu.dot_dimension_numbers<[1], [0], [0], [1], [0, 0, 1, 1], [], []>} : vector<8x16xf32>, vector<16x64xf32>, vector<8x64xf32> -> vector<8x64xf32>
    %53 = arith.addf %51, %52 : vector<8x64xf32>
    %54 = vector.extract_strided_slice %53 {offsets = [0, 0], sizes = [8, 48], strides = [1, 1]} : vector<8x64xf32> to vector<8x48xf32>
    %55 = arith.negf %54 : vector<8x48xf32>
    %56 = math.exp %55 : vector<8x48xf32>
    %cst_21 = arith.constant 1.000000e+00 : f32
    %57 = vector.broadcast %cst_21 : f32 to vector<8x48xf32>
    %58 = arith.addf %57, %56 : vector<8x48xf32>
    %59 = arith.divf %57, %58 : vector<8x48xf32>
    %60 = vector.extract_strided_slice %59 {offsets = [0, 0], sizes = [8, 16], strides = [1, 1]} : vector<8x48xf32> to vector<8x16xf32>
    %61 = vector.extract_strided_slice %59 {offsets = [0, 16], sizes = [8, 16], strides = [1, 1]} : vector<8x48xf32> to vector<8x16xf32>
    %62 = vector.extract_strided_slice %59 {offsets = [0, 32], sizes = [8, 16], strides = [1, 1]} : vector<8x48xf32> to vector<8x16xf32>
    %63 = vector.extract_strided_slice %53 {offsets = [0, 48], sizes = [8, 16], strides = [1, 1]} : vector<8x64xf32> to vector<8x16xf32>
    %64 = math.tanh %63 : vector<8x16xf32>
    %65 = arith.mulf %61, %48 : vector<8x16xf32>
    %66 = arith.mulf %60, %64 : vector<8x16xf32>
    %67 = arith.addf %65, %66 : vector<8x16xf32>
    %68 = math.tanh %67 : vector<8x16xf32>
    %69 = arith.mulf %62, %68 : vector<8x16xf32>
    %70 = vector.extract_strided_slice %10 {offsets = [24, 0], sizes = [8, 64], strides = [1, 1]} : vector<64x64xf32> to vector<8x64xf32>
    %cst_22 = arith.constant dense<0.000000e+00> : vector<8x64xf32>
    %71 = tpu.matmul %69, %0, %cst_22 {dimension_numbers = #tpu.dot_dimension_numbers<[1], [0], [0], [1], [0, 0, 1, 1], [], []>} : vector<8x16xf32>, vector<16x64xf32>, vector<8x64xf32> -> vector<8x64xf32>
    %72 = arith.addf %70, %71 : vector<8x64xf32>
    %73 = vector.extract_strided_slice %72 {offsets = [0, 0], sizes = [8, 48], strides = [1, 1]} : vector<8x64xf32> to vector<8x48xf32>
    %74 = arith.negf %73 : vector<8x48xf32>
    %75 = math.exp %74 : vector<8x48xf32>
    %cst_23 = arith.constant 1.000000e+00 : f32
    %76 = vector.broadcast %cst_23 : f32 to vector<8x48xf32>
    %77 = arith.addf %76, %75 : vector<8x48xf32>
    %78 = arith.divf %76, %77 : vector<8x48xf32>
    %79 = vector.extract_strided_slice %78 {offsets = [0, 0], sizes = [8, 16], strides = [1, 1]} : vector<8x48xf32> to vector<8x16xf32>
    %80 = vector.extract_strided_slice %78 {offsets = [0, 16], sizes = [8, 16], strides = [1, 1]} : vector<8x48xf32> to vector<8x16xf32>
    %81 = vector.extract_strided_slice %78 {offsets = [0, 32], sizes = [8, 16], strides = [1, 1]} : vector<8x48xf32> to vector<8x16xf32>
    %82 = vector.extract_strided_slice %72 {offsets = [0, 48], sizes = [8, 16], strides = [1, 1]} : vector<8x64xf32> to vector<8x16xf32>
    %83 = math.tanh %82 : vector<8x16xf32>
    %84 = arith.mulf %80, %67 : vector<8x16xf32>
    %85 = arith.mulf %79, %83 : vector<8x16xf32>
    %86 = arith.addf %84, %85 : vector<8x16xf32>
    %87 = math.tanh %86 : vector<8x16xf32>
    %88 = arith.mulf %81, %87 : vector<8x16xf32>
    %89 = vector.extract_strided_slice %10 {offsets = [32, 0], sizes = [8, 64], strides = [1, 1]} : vector<64x64xf32> to vector<8x64xf32>
    %cst_24 = arith.constant dense<0.000000e+00> : vector<8x64xf32>
    %90 = tpu.matmul %88, %0, %cst_24 {dimension_numbers = #tpu.dot_dimension_numbers<[1], [0], [0], [1], [0, 0, 1, 1], [], []>} : vector<8x16xf32>, vector<16x64xf32>, vector<8x64xf32> -> vector<8x64xf32>
    %91 = arith.addf %89, %90 : vector<8x64xf32>
    %92 = vector.extract_strided_slice %91 {offsets = [0, 0], sizes = [8, 48], strides = [1, 1]} : vector<8x64xf32> to vector<8x48xf32>
    %93 = arith.negf %92 : vector<8x48xf32>
    %94 = math.exp %93 : vector<8x48xf32>
    %cst_25 = arith.constant 1.000000e+00 : f32
    %95 = vector.broadcast %cst_25 : f32 to vector<8x48xf32>
    %96 = arith.addf %95, %94 : vector<8x48xf32>
    %97 = arith.divf %95, %96 : vector<8x48xf32>
    %98 = vector.extract_strided_slice %97 {offsets = [0, 0], sizes = [8, 16], strides = [1, 1]} : vector<8x48xf32> to vector<8x16xf32>
    %99 = vector.extract_strided_slice %97 {offsets = [0, 16], sizes = [8, 16], strides = [1, 1]} : vector<8x48xf32> to vector<8x16xf32>
    %100 = vector.extract_strided_slice %97 {offsets = [0, 32], sizes = [8, 16], strides = [1, 1]} : vector<8x48xf32> to vector<8x16xf32>
    %101 = vector.extract_strided_slice %91 {offsets = [0, 48], sizes = [8, 16], strides = [1, 1]} : vector<8x64xf32> to vector<8x16xf32>
    %102 = math.tanh %101 : vector<8x16xf32>
    %103 = arith.mulf %99, %86 : vector<8x16xf32>
    %104 = arith.mulf %98, %102 : vector<8x16xf32>
    %105 = arith.addf %103, %104 : vector<8x16xf32>
    %106 = math.tanh %105 : vector<8x16xf32>
    %107 = arith.mulf %100, %106 : vector<8x16xf32>
    %108 = vector.extract_strided_slice %10 {offsets = [40, 0], sizes = [8, 64], strides = [1, 1]} : vector<64x64xf32> to vector<8x64xf32>
    %cst_26 = arith.constant dense<0.000000e+00> : vector<8x64xf32>
    %109 = tpu.matmul %107, %0, %cst_26 {dimension_numbers = #tpu.dot_dimension_numbers<[1], [0], [0], [1], [0, 0, 1, 1], [], []>} : vector<8x16xf32>, vector<16x64xf32>, vector<8x64xf32> -> vector<8x64xf32>
    %110 = arith.addf %108, %109 : vector<8x64xf32>
    %111 = vector.extract_strided_slice %110 {offsets = [0, 0], sizes = [8, 48], strides = [1, 1]} : vector<8x64xf32> to vector<8x48xf32>
    %112 = arith.negf %111 : vector<8x48xf32>
    %113 = math.exp %112 : vector<8x48xf32>
    %cst_27 = arith.constant 1.000000e+00 : f32
    %114 = vector.broadcast %cst_27 : f32 to vector<8x48xf32>
    %115 = arith.addf %114, %113 : vector<8x48xf32>
    %116 = arith.divf %114, %115 : vector<8x48xf32>
    %117 = vector.extract_strided_slice %116 {offsets = [0, 0], sizes = [8, 16], strides = [1, 1]} : vector<8x48xf32> to vector<8x16xf32>
    %118 = vector.extract_strided_slice %116 {offsets = [0, 16], sizes = [8, 16], strides = [1, 1]} : vector<8x48xf32> to vector<8x16xf32>
    %119 = vector.extract_strided_slice %116 {offsets = [0, 32], sizes = [8, 16], strides = [1, 1]} : vector<8x48xf32> to vector<8x16xf32>
    %120 = vector.extract_strided_slice %110 {offsets = [0, 48], sizes = [8, 16], strides = [1, 1]} : vector<8x64xf32> to vector<8x16xf32>
    %121 = math.tanh %120 : vector<8x16xf32>
    %122 = arith.mulf %118, %105 : vector<8x16xf32>
    %123 = arith.mulf %117, %121 : vector<8x16xf32>
    %124 = arith.addf %122, %123 : vector<8x16xf32>
    %125 = math.tanh %124 : vector<8x16xf32>
    %126 = arith.mulf %119, %125 : vector<8x16xf32>
    %127 = vector.extract_strided_slice %10 {offsets = [48, 0], sizes = [8, 64], strides = [1, 1]} : vector<64x64xf32> to vector<8x64xf32>
    %cst_28 = arith.constant dense<0.000000e+00> : vector<8x64xf32>
    %128 = tpu.matmul %126, %0, %cst_28 {dimension_numbers = #tpu.dot_dimension_numbers<[1], [0], [0], [1], [0, 0, 1, 1], [], []>} : vector<8x16xf32>, vector<16x64xf32>, vector<8x64xf32> -> vector<8x64xf32>
    %129 = arith.addf %127, %128 : vector<8x64xf32>
    %130 = vector.extract_strided_slice %129 {offsets = [0, 0], sizes = [8, 48], strides = [1, 1]} : vector<8x64xf32> to vector<8x48xf32>
    %131 = arith.negf %130 : vector<8x48xf32>
    %132 = math.exp %131 : vector<8x48xf32>
    %cst_29 = arith.constant 1.000000e+00 : f32
    %133 = vector.broadcast %cst_29 : f32 to vector<8x48xf32>
    %134 = arith.addf %133, %132 : vector<8x48xf32>
    %135 = arith.divf %133, %134 : vector<8x48xf32>
    %136 = vector.extract_strided_slice %135 {offsets = [0, 0], sizes = [8, 16], strides = [1, 1]} : vector<8x48xf32> to vector<8x16xf32>
    %137 = vector.extract_strided_slice %135 {offsets = [0, 16], sizes = [8, 16], strides = [1, 1]} : vector<8x48xf32> to vector<8x16xf32>
    %138 = vector.extract_strided_slice %135 {offsets = [0, 32], sizes = [8, 16], strides = [1, 1]} : vector<8x48xf32> to vector<8x16xf32>
    %139 = vector.extract_strided_slice %129 {offsets = [0, 48], sizes = [8, 16], strides = [1, 1]} : vector<8x64xf32> to vector<8x16xf32>
    %140 = math.tanh %139 : vector<8x16xf32>
    %141 = arith.mulf %137, %124 : vector<8x16xf32>
    %142 = arith.mulf %136, %140 : vector<8x16xf32>
    %143 = arith.addf %141, %142 : vector<8x16xf32>
    %144 = math.tanh %143 : vector<8x16xf32>
    %145 = arith.mulf %138, %144 : vector<8x16xf32>
    %146 = vector.extract_strided_slice %10 {offsets = [56, 0], sizes = [8, 64], strides = [1, 1]} : vector<64x64xf32> to vector<8x64xf32>
    %cst_30 = arith.constant dense<0.000000e+00> : vector<8x64xf32>
    %147 = tpu.matmul %145, %0, %cst_30 {dimension_numbers = #tpu.dot_dimension_numbers<[1], [0], [0], [1], [0, 0, 1, 1], [], []>} : vector<8x16xf32>, vector<16x64xf32>, vector<8x64xf32> -> vector<8x64xf32>
    %148 = arith.addf %146, %147 : vector<8x64xf32>
    %149 = vector.extract_strided_slice %148 {offsets = [0, 0], sizes = [8, 48], strides = [1, 1]} : vector<8x64xf32> to vector<8x48xf32>
    %150 = arith.negf %149 : vector<8x48xf32>
    %151 = math.exp %150 : vector<8x48xf32>
    %cst_31 = arith.constant 1.000000e+00 : f32
    %152 = vector.broadcast %cst_31 : f32 to vector<8x48xf32>
    %153 = arith.addf %152, %151 : vector<8x48xf32>
    %154 = arith.divf %152, %153 : vector<8x48xf32>
    %155 = vector.extract_strided_slice %154 {offsets = [0, 0], sizes = [8, 16], strides = [1, 1]} : vector<8x48xf32> to vector<8x16xf32>
    %156 = vector.extract_strided_slice %154 {offsets = [0, 16], sizes = [8, 16], strides = [1, 1]} : vector<8x48xf32> to vector<8x16xf32>
    %157 = vector.extract_strided_slice %154 {offsets = [0, 32], sizes = [8, 16], strides = [1, 1]} : vector<8x48xf32> to vector<8x16xf32>
    %158 = vector.extract_strided_slice %148 {offsets = [0, 48], sizes = [8, 16], strides = [1, 1]} : vector<8x64xf32> to vector<8x16xf32>
    %159 = math.tanh %158 : vector<8x16xf32>
    %160 = arith.mulf %156, %143 : vector<8x16xf32>
    %161 = arith.mulf %155, %159 : vector<8x16xf32>
    %162 = arith.addf %160, %161 : vector<8x16xf32>
    %163 = math.tanh %162 : vector<8x16xf32>
    %164 = arith.mulf %157, %163 : vector<8x16xf32>
    %165 = math.tanh %164 : vector<8x16xf32>
    %cst_32 = arith.constant dense<0.000000e+00> : vector<8x8xf32>
    %166 = tpu.matmul %165, %1, %cst_32 {dimension_numbers = #tpu.dot_dimension_numbers<[1], [0], [0], [1], [0, 0, 1, 1], [], []>} : vector<8x16xf32>, vector<16x8xf32>, vector<8x8xf32> -> vector<8x8xf32>
    %167 = vector.broadcast %2 : vector<1x8xf32> to vector<8x8xf32>
    %168 = arith.addf %166, %167 : vector<8x8xf32>
    %cst_33 = arith.constant 0.000000e+00 : f32
    %169 = vector.broadcast %cst_33 : f32 to vector<8x8xf32>
    %170 = arith.cmpf ogt, %168, %169 : vector<8x8xf32>
    %cst_34 = arith.constant 0.00999999977 : f32
    %171 = vector.broadcast %cst_34 : f32 to vector<8x8xf32>
    %172 = arith.mulf %171, %168 : vector<8x8xf32>
    %173 = arith.select %170, %168, %172 : vector<8x8xi1>, vector<8x8xf32>
    %174 = vector.broadcast %3 : vector<1x8xf32> to vector<8x8xf32>
    %175 = arith.mulf %173, %174 : vector<8x8xf32>
    %cst_35 = arith.constant dense<0.000000e+00> : vector<8xf32>
    %176 = vector.multi_reduction <add>, %175, %cst_35 [1] : vector<8x8xf32> to vector<8xf32>
    %177 = vector.shape_cast %176 : vector<8xf32> to vector<8x1xf32>
    %c0_36 = arith.constant 0 : index
    %c0_37 = arith.constant 0 : index
    %178 = memref.load %arg8[%c0_36, %c0_37] : memref<1x1xf32, #tpu.memory_space<smem>>
    %179 = vector.broadcast %178 : f32 to vector<8x1xf32>
    %180 = arith.addf %177, %179 : vector<8x1xf32>
    %c0_38 = arith.constant 0 : index
    %c0_39 = arith.constant 0 : index
    %181 = vector.load %arg9[%c0_38, %c0_39] : memref<8x1xf32, #tpu.memory_space<vmem>>, vector<8x1xf32>
    tpu.vector_store %arg9[%c0_38, %c0_39], %180 {strides = array<i32>} : memref<8x1xf32, #tpu.memory_space<vmem>>, vector<8x1xf32>,
    return
  }
  func.func @transform_0(%arg0: i32) -> (i32, i32, i32) {
    %c0_i32 = arith.constant 0 : i32
    %c0_i32_0 = arith.constant 0 : i32
    %c0_i32_1 = arith.constant 0 : i32
    return %arg0, %c0_i32, %c0_i32_0 : i32, i32, i32
  }
  func.func @transform_1(%arg0: i32) -> (i32, i32) {
    %c0_i32 = arith.constant 0 : i32
    %c0_i32_0 = arith.constant 0 : i32
    %c0_i32_1 = arith.constant 0 : i32
    return %c0_i32, %c0_i32_0 : i32, i32
  }
  func.func @transform_2(%arg0: i32) -> (i32, i32) {
    %c0_i32 = arith.constant 0 : i32
    %c0_i32_0 = arith.constant 0 : i32
    %c0_i32_1 = arith.constant 0 : i32
    return %c0_i32, %c0_i32_0 : i32, i32
  }
  func.func @transform_3(%arg0: i32) -> (i32, i32) {
    %c0_i32 = arith.constant 0 : i32
    %c0_i32_0 = arith.constant 0 : i32
    %c0_i32_1 = arith.constant 0 : i32
    return %c0_i32, %c0_i32_0 : i32, i32
  }
  func.func @transform_4(%arg0: i32) -> (i32, i32) {
    %c0_i32 = arith.constant 0 : i32
    %c0_i32_0 = arith.constant 0 : i32
    %c0_i32_1 = arith.constant 0 : i32
    return %c0_i32, %c0_i32_0 : i32, i32
  }
  func.func @transform_5(%arg0: i32) -> (i32, i32) {
    %c0_i32 = arith.constant 0 : i32
    %c0_i32_0 = arith.constant 0 : i32
    %c0_i32_1 = arith.constant 0 : i32
    return %c0_i32, %c0_i32_0 : i32, i32
  }
  func.func @transform_6(%arg0: i32) -> (i32, i32) {
    %c0_i32 = arith.constant 0 : i32
    %c0_i32_0 = arith.constant 0 : i32
    %c0_i32_1 = arith.constant 0 : i32
    return %c0_i32, %c0_i32_0 : i32, i32
  }
  func.func @transform_7(%arg0: i32) -> (i32, i32) {
    %c0_i32 = arith.constant 0 : i32
    %c0_i32_0 = arith.constant 0 : i32
    %c0_i32_1 = arith.constant 0 : i32
    return %c0_i32, %c0_i32_0 : i32, i32
  }
  func.func @transform_8(%arg0: i32) -> (i32, i32) {
    %c0_i32 = arith.constant 0 : i32
    %c0_i32_0 = arith.constant 0 : i32
    return %arg0, %c0_i32 : i32, i32
  }
}

</mosaic_0001>

<llo_original>
// kernel: tpu_custom_call.1
$region0: #{tpu_custom_call.1}
  #allocation0 [shape = 'u32[]', space=smem, size = 0x4, offset = 0x4, fixed_abs, tag = 'smem constant byte address 0x4 - core index']
  #allocation1 [shape = 'u32[144,128]{1,0:T(1,128)}', space=vmem, size = 0x12000, scoped, tag = 'internal scratch']
  #allocation2 [shape = 'f32[1,1]{1,0:T(1,128)S(6)}', space=smem, size = 0x200, scoped, tag = 'scoped memory for tpu_custom_call.1']
  %s0 = inlined_call_operand.vmem [shape: f32[2,64,4], index: 0, kind: input, shape index: {}]
  %s1 = inlined_call_operand.vmem [shape: f32[4,64], index: 1, kind: input, shape index: {}]
  %s2 = inlined_call_operand.vmem [shape: f32[16,64], index: 2, kind: input, shape index: {}]
  %s3 = inlined_call_operand.vmem [shape: f32[1,64], index: 3, kind: input, shape index: {}]
  %s4 = inlined_call_operand.vmem [shape: f32[16,8], index: 4, kind: input, shape index: {}]
  %s5 = inlined_call_operand.vmem [shape: f32[1,8], index: 5, kind: input, shape index: {}]
  %s6 = inlined_call_operand.vmem [shape: f32[1,8], index: 6, kind: input, shape index: {}]
  %s7 = inlined_call_operand.<no memory space> [shape: f32[1,1], index: 7, kind: input, shape index: {}]
  %s8 = inlined_call_operand.vmem [shape: f32[16,1], index: 8, kind: output, shape index: {}]
  %s9 = sld [smem:[#allocation0]]
  $region65: #{tpu_custom_call.1} parent=0
    _
  %s11 = ssub.s32 1, %s9
  %s12 = scalar_select 0, %s11, %s9
  %13 = sst [smem:[#allocation2]] %s7
  loop: start=0, step=1, limit=4
  $region2: #{tpu_custom_call.1} parent=0 // loop_pre_header
    _
  $region3: #{tpu_custom_call.1} parent=0 // loop_header
    %s15 = sphi 0, %s19
    %p16 = scmp.ge.s32.totalorder %s15, 4
    %s25 = sphi 0, %s27
    %s28 = sphi 0, %s25
    %s29 = sphi 0, %s28
    %s45 = sphi 0, %s29
    %s49 = sphi 0, %s49
    %s51 = sphi 0, %s49
    %s52 = sphi 0, %s51
    %s66 = sphi 0, %s52
    %s70 = sphi 0, %s70
    %s72 = sphi 0, %s70
    %s73 = sphi 0, %s72
    %s87 = sphi 0, %s73
    %s91 = sphi 0, %s91
    %s93 = sphi 0, %s91
    %s94 = sphi 0, %s93
    %s108 = sphi 0, %s94
    %s112 = sphi 0, %s112
    %s114 = sphi 0, %s112
    %s115 = sphi 0, %s114
    %s129 = sphi 0, %s115
    %s133 = sphi 0, %s133
    %s135 = sphi 0, %s133
    %s136 = sphi 0, %s135
    %s150 = sphi 0, %s136
    %s154 = sphi 0, %s154
    %s156 = sphi 0, %s154
    %s157 = sphi 0, %s156
    %s171 = sphi 0, %s157
    %s175 = sphi 0, %s175
    %s177 = sphi 0, %s175
    %s178 = sphi 0, %s177
    %s192 = sphi 0, %s178
    %s198 = sphi 0, %s200
    %s201 = sphi 0, %s198
    %s202 = sphi 0, %s201
    %s218 = sphi 0, %s202
  $region4: #{tpu_custom_call.1} parent=0 // loop_header_branch
    %18 = sbr.rel (%p16) target = $region8
  $region5: #{tpu_custom_call.1} parent=0 // loop_body
    %s20 = ssub.s32 %s15, 1
    %s21 = ssub.s32 %s15, 2
    %s22 = sadd.s32 %s15, 1
    %s23 = ssub.s32 %s15, %s22
    %p24 = scmp.eq.s32.totalorder %s23, 0
    %s26 = sadd.s32 %s25, 1
    %s27 = scalar_select %p24, %s25, %s26
    %p30 = pneg %p24
    %p31 = scmp.eq.s32.totalorder %s15, 1
    %p32 = por %p30, %p31
    %p33 = scmp.ne.s32.totalorder %s25, %s28
    %p34 = scmp.eq.s32.totalorder %s15, 0
    %p35 = por %p33, %p34
    %p36 = scmp.ne.s32.totalorder %s25, %s28
    %p37 = scmp.eq.s32.totalorder %s20, 1
    %p38 = por %p36, %p37
    %p39 = scmp.ne.s32.totalorder %s28, %s29
    %p40 = scmp.eq.s32.totalorder %s20, 0
    %p41 = por %p39, %p40
    %p42 = scmp.ne.s32.totalorder %s28, %s29
    %p43 = scmp.eq.s32.totalorder %s21, 1
    %p44 = por %p42, %p43
    %p46 = scmp.ne.s32.totalorder %s29, %s45
    %p47 = scmp.eq.s32.totalorder %s21, 0
    %p48 = por %p46, %p47
    %s50 = sadd.s32 %s49, 1
    %p53 = scmp.eq.s32.totalorder %s15, 1
    %p54 = scmp.ne.s32.totalorder %s49, %s51
    %p55 = scmp.eq.s32.totalorder %s15, 0
    %p56 = por %p54, %p55
    %p57 = scmp.ne.s32.totalorder %s49, %s51
    %p58 = scmp.eq.s32.totalorder %s20, 1
    %p59 = por %p57, %p58
    %p60 = scmp.ne.s32.totalorder %s51, %s52
    %p61 = scmp.eq.s32.totalorder %s20, 0
    %p62 = por %p60, %p61
    %p63 = scmp.ne.s32.totalorder %s51, %s52
    %p64 = scmp.eq.s32.totalorder %s21, 1
    %p65 = por %p63, %p64
    %p67 = scmp.ne.s32.totalorder %s52, %s66
    %p68 = scmp.eq.s32.totalorder %s21, 0
    %p69 = por %p67, %p68
    %s71 = sadd.s32 %s70, 1
    %p74 = scmp.eq.s32.totalorder %s15, 1
    %p75 = scmp.ne.s32.totalorder %s70, %s72
    %p76 = scmp.eq.s32.totalorder %s15, 0
    %p77 = por %p75, %p76
    %p78 = scmp.ne.s32.totalorder %s70, %s72
    %p79 = scmp.eq.s32.totalorder %s20, 1
    %p80 = por %p78, %p79
    %p81 = scmp.ne.s32.totalorder %s72, %s73
    %p82 = scmp.eq.s32.totalorder %s20, 0
    %p83 = por %p81, %p82
    %p84 = scmp.ne.s32.totalorder %s72, %s73
    %p85 = scmp.eq.s32.totalorder %s21, 1
    %p86 = por %p84, %p85
    %p88 = scmp.ne.s32.totalorder %s73, %s87
    %p89 = scmp.eq.s32.totalorder %s21, 0
    %p90 = por %p88, %p89
    %s92 = sadd.s32 %s91, 1
    %p95 = scmp.eq.s32.totalorder %s15, 1
    %p96 = scmp.ne.s32.totalorder %s91, %s93
    %p97 = scmp.eq.s32.totalorder %s15, 0
    %p98 = por %p96, %p97
    %p99 = scmp.ne.s32.totalorder %s91, %s93
    %p100 = scmp.eq.s32.totalorder %s20, 1
    %p101 = por %p99, %p100
    %p102 = scmp.ne.s32.totalorder %s93, %s94
    %p103 = scmp.eq.s32.totalorder %s20, 0
    %p104 = por %p102, %p103
    %p105 = scmp.ne.s32.totalorder %s93, %s94
    %p106 = scmp.eq.s32.totalorder %s21, 1
    %p107 = por %p105, %p106
    %p109 = scmp.ne.s32.totalorder %s94, %s108
    %p110 = scmp.eq.s32.totalorder %s21, 0
    %p111 = por %p109, %p110
    %s113 = sadd.s32 %s112, 1
    %p116 = scmp.eq.s32.totalorder %s15, 1
    %p117 = scmp.ne.s32.totalorder %s112, %s114
    %p118 = scmp.eq.s32.totalorder %s15, 0
    %p119 = por %p117, %p118
    %p120 = scmp.ne.s32.totalorder %s112, %s114
    %p121 = scmp.eq.s32.totalorder %s20, 1
    %p122 = por %p120, %p121
    %p123 = scmp.ne.s32.totalorder %s114, %s115
    %p124 = scmp.eq.s32.totalorder %s20, 0
    %p125 = por %p123, %p124
    %p126 = scmp.ne.s32.totalorder %s114, %s115
    %p127 = scmp.eq.s32.totalorder %s21, 1
    %p128 = por %p126, %p127
    %p130 = scmp.ne.s32.totalorder %s115, %s129
    %p131 = scmp.eq.s32.totalorder %s21, 0
    %p132 = por %p130, %p131
    %s134 = sadd.s32 %s133, 1
    %p137 = scmp.eq.s32.totalorder %s15, 1
    %p138 = scmp.ne.s32.totalorder %s133, %s135
    %p139 = scmp.eq.s32.totalorder %s15, 0
    %p140 = por %p138, %p139
    %p141 = scmp.ne.s32.totalorder %s133, %s135
    %p142 = scmp.eq.s32.totalorder %s20, 1
    %p143 = por %p141, %p142
    %p144 = scmp.ne.s32.totalorder %s135, %s136
    %p145 = scmp.eq.s32.totalorder %s20, 0
    %p146 = por %p144, %p145
    %p147 = scmp.ne.s32.totalorder %s135, %s136
    %p148 = scmp.eq.s32.totalorder %s21, 1
    %p149 = por %p147, %p148
    %p151 = scmp.ne.s32.totalorder %s136, %s150
    %p152 = scmp.eq.s32.totalorder %s21, 0
    %p153 = por %p151, %p152
    %s155 = sadd.s32 %s154, 1
    %p158 = scmp.eq.s32.totalorder %s15, 1
    %p159 = scmp.ne.s32.totalorder %s154, %s156
    %p160 = scmp.eq.s32.totalorder %s15, 0
    %p161 = por %p159, %p160
    %p162 = scmp.ne.s32.totalorder %s154, %s156
    %p163 = scmp.eq.s32.totalorder %s20, 1
    %p164 = por %p162, %p163
    %p165 = scmp.ne.s32.totalorder %s156, %s157
    %p166 = scmp.eq.s32.totalorder %s20, 0
    %p167 = por %p165, %p166
    %p168 = scmp.ne.s32.totalorder %s156, %s157
    %p169 = scmp.eq.s32.totalorder %s21, 1
    %p170 = por %p168, %p169
    %p172 = scmp.ne.s32.totalorder %s157, %s171
    %p173 = scmp.eq.s32.totalorder %s21, 0
    %p174 = por %p172, %p173
    %s176 = sadd.s32 %s175, 1
    %p179 = scmp.eq.s32.totalorder %s15, 1
    %p180 = scmp.ne.s32.totalorder %s175, %s177
    %p181 = scmp.eq.s32.totalorder %s15, 0
    %p182 = por %p180, %p181
    %p183 = scmp.ne.s32.totalorder %s175, %s177
    %p184 = scmp.eq.s32.totalorder %s20, 1
    %p185 = por %p183, %p184
    %p186 = scmp.ne.s32.totalorder %s177, %s178
    %p187 = scmp.eq.s32.totalorder %s20, 0
    %p188 = por %p186, %p187
    %p189 = scmp.ne.s32.totalorder %s177, %s178
    %p190 = scmp.eq.s32.totalorder %s21, 1
    %p191 = por %p189, %p190
    %p193 = scmp.ne.s32.totalorder %s178, %s192
    %p194 = scmp.eq.s32.totalorder %s21, 0
    %p195 = por %p193, %p194
    %s196 = ssub.s32 %s15, %s22
    %p197 = scmp.eq.s32.totalorder %s196, 0
    %s199 = sadd.s32 %s198, 1
    %s200 = scalar_select %p197, %s198, %s199
    %p203 = pneg %p197
    %p204 = scmp.eq.s32.totalorder %s15, 1
    %p205 = por %p203, %p204
    %p206 = scmp.ne.s32.totalorder %s198, %s201
    %p207 = scmp.eq.s32.totalorder %s15, 0
    %p208 = por %p206, %p207
    %p209 = scmp.ne.s32.totalorder %s198, %s201
    %p210 = scmp.eq.s32.totalorder %s20, 1
    %p211 = por %p209, %p210
    %p212 = scmp.ne.s32.totalorder %s201, %s202
    %p213 = scmp.eq.s32.totalorder %s20, 0
    %p214 = por %p212, %p213
    %p215 = scmp.ne.s32.totalorder %s201, %s202
    %p216 = scmp.eq.s32.totalorder %s21, 1
    %p217 = por %p215, %p216
    %p219 = scmp.ne.s32.totalorder %s202, %s218
    %p220 = scmp.eq.s32.totalorder %s21, 0
    %p221 = por %p219, %p220
    %p222 = scmp.le.s32.totalorder 1, %s15
    %p223 = scmp.lt.s32.totalorder %s15, 3
    %p224 = pnand %p222, %p223
    %p225 = pneg %p224
    // Predicated region
    $region9: #{tpu_custom_call.1} parent=5 // pred_check
      _
    $region10: #{tpu_custom_call.1} parent=5 // pred_check_branch
      %227 = sbr.rel (%p224) target = $region12
    $region11: #{tpu_custom_call.1} parent=5 // pred_region
      %s228 = ssub.s32 %s15, 1
      // Predicated region
      $region13: #{tpu_custom_call.1} parent=11 // pred_check
        %p229 = pneg %p62
      $region14: #{tpu_custom_call.1} parent=11 // pred_check_branch
        %231 = sbr.rel (%p229) target = $region16
      $region15: #{tpu_custom_call.1} parent=11 // pred_region
        _
      $region16: #{tpu_custom_call.1} parent=11 // pred_fallthru
        _
      // Predicated region
      $region17: #{tpu_custom_call.1} parent=11 // pred_check
        %p232 = pneg %p83
      $region18: #{tpu_custom_call.1} parent=11 // pred_check_branch
        %234 = sbr.rel (%p232) target = $region20
      $region19: #{tpu_custom_call.1} parent=11 // pred_region
        _
      $region20: #{tpu_custom_call.1} parent=11 // pred_fallthru
        _
      // Predicated region
      $region21: #{tpu_custom_call.1} parent=11 // pred_check
        %p235 = pneg %p104
      $region22: #{tpu_custom_call.1} parent=11 // pred_check_branch
        %237 = sbr.rel (%p235) target = $region24
      $region23: #{tpu_custom_call.1} parent=11 // pred_region
        _
      $region24: #{tpu_custom_call.1} parent=11 // pred_fallthru
        _
      // Predicated region
      $region25: #{tpu_custom_call.1} parent=11 // pred_check
        %p238 = pneg %p125
      $region26: #{tpu_custom_call.1} parent=11 // pred_check_branch
        %240 = sbr.rel (%p238) target = $region28
      $region27: #{tpu_custom_call.1} parent=11 // pred_region
        _
      $region28: #{tpu_custom_call.1} parent=11 // pred_fallthru
        _
      // Predicated region
      $region29: #{tpu_custom_call.1} parent=11 // pred_check
        %p241 = pneg %p146
      $region30: #{tpu_custom_call.1} parent=11 // pred_check_branch
        %243 = sbr.rel (%p241) target = $region32
      $region31: #{tpu_custom_call.1} parent=11 // pred_region
        _
      $region32: #{tpu_custom_call.1} parent=11 // pred_fallthru
        _
      // Predicated region
      $region33: #{tpu_custom_call.1} parent=11 // pred_check
        %p244 = pneg %p167
      $region34: #{tpu_custom_call.1} parent=11 // pred_check_branch
        %246 = sbr.rel (%p244) target = $region36
      $region35: #{tpu_custom_call.1} parent=11 // pred_region
        _
      $region36: #{tpu_custom_call.1} parent=11 // pred_fallthru
        _
      // Predicated region
      $region37: #{tpu_custom_call.1} parent=11 // pred_check
        %p247 = pneg %p188
      $region38: #{tpu_custom_call.1} parent=11 // pred_check_branch
        %249 = sbr.rel (%p247) target = $region40
      $region39: #{tpu_custom_call.1} parent=11 // pred_region
        _
      $region40: #{tpu_custom_call.1} parent=11 // pred_fallthru
        _
    $region12: #{tpu_custom_call.1} parent=5 // pred_fallthru
      _
    %p250 = scmp.lt.s32.totalorder %s15, 2
    // Predicated region
    $region41: #{tpu_custom_call.1} parent=5 // pred_check
      %p251 = pneg %p250
    $region42: #{tpu_custom_call.1} parent=5 // pred_check_branch
      %253 = sbr.rel (%p251) target = $region44
    $region43: #{tpu_custom_call.1} parent=5 // pred_region
      // Predicated region
      $region45: #{tpu_custom_call.1} parent=43 // pred_check
        %p254 = pneg %p35
      $region46: #{tpu_custom_call.1} parent=43 // pred_check_branch
        %256 = sbr.rel (%p254) target = $region48
      $region47: #{tpu_custom_call.1} parent=43 // pred_region
        %p257 = scmp.lt.s32.totalorder %s15, 1
        %s258 = scalar_select %p257, %s15, 1
        %s259 = smul.addr %s258, 8
        %s260 = smul.addr %s259, 8
        %s261 = scalar_lea.vmem %s0, %s260
      $region48: #{tpu_custom_call.1} parent=43 // pred_fallthru
        _
    $region44: #{tpu_custom_call.1} parent=5 // pred_fallthru
      _
    %p262 = scmp.le.s32.totalorder 1, %s15
    %p263 = scmp.lt.s32.totalorder %s15, 3
    %p264 = pnand %p262, %p263
    %p265 = pneg %p264
    // Predicated region
    $region49: #{tpu_custom_call.1} parent=5 // pred_check
      _
    $region50: #{tpu_custom_call.1} parent=5 // pred_check_branch
      %267 = sbr.rel (%p264) target = $region52
    $region51: #{tpu_custom_call.1} parent=5 // pred_region
      %s268 = ssub.s32 %s15, 1
      %p269 = scmp.lt.s32.totalorder %s20, 1
      %s270 = scalar_select %p269, %s20, 1
      %s271 = smul.addr %s270, 8
      %s272 = smul.addr %s271, 8
      %s273 = scalar_lea.vmem %s0, %s272
      %p274 = pneg %p41
      %p275 = pneg %p38
      %p276 = pneg %p62
      %p277 = pneg %p59
      %p278 = pneg %p83
      %p279 = pneg %p80
      %p280 = pneg %p104
      %p281 = pneg %p101
      %p282 = pneg %p125
      %p283 = pneg %p122
      %p284 = pneg %p146
      %p285 = pneg %p143
      %p286 = pneg %p167
      %p287 = pneg %p164
      %p288 = pneg %p188
      %p289 = pneg %p185
      %p290 = pneg %p214
      %p291 = pneg %p211
      %p292 = scmp.lt.s32.totalorder %s20, 1
      %s293 = scalar_select %p292, %s20, 1
      %s294 = smul.addr %s293, 8
      %s295 = scalar_lea.vmem %s8, %s294
      %p296 = scmp.lt.s32.totalorder %s20, 1
      %s297 = scalar_select %p296, %s20, 1
      %s298 = smul.addr %s297, 8
      %s299 = smul.addr %s298, 8
      %s300 = scalar_lea.vmem %s0, %s299
      %p301 = scmp.lt.s32.totalorder %s20, 1
      %s302 = scalar_select %p301, %s20, 1
      %s303 = smul.addr %s302, 8
      %s304 = scalar_lea.vmem %s8, %s303
      %v305 = vld [vmem:[%s2] sm:$0xff]
      %v306 = vld [vmem:[%s2 + $0x8] sm:$0xff]
      %v307 = vld [vmem:[%s4] sm:$0xff]
      %v308 = vld [vmem:[%s4 + $0x8] sm:$0xff]
      %v309 = vld [vmem:[%s5] sm:$0x1]
      %v310 = vld [vmem:[%s6] sm:$0x1]
      %v311 = vld [vmem:[%s300] sm:$0xff]
      %v312 = vld [vmem:[%s300 + $0x8] sm:$0xff]
      %v313 = vld [vmem:[%s300 + $0x10] sm:$0xff]
      %v314 = vld [vmem:[%s300 + $0x18] sm:$0xff]
      %v315 = vld [vmem:[%s300 + $0x20] sm:$0xff]
      %v316 = vld [vmem:[%s300 + $0x28] sm:$0xff]
      %v317 = vld [vmem:[%s300 + $0x30] sm:$0xff]
      %v318 = vld [vmem:[%s300 + $0x38] sm:$0xff]
      %v319 = vld [vmem:[%s1] sm:$0xf]
      %v320 = vld [vmem:[%s3] sm:$0x1]
      %v322 = vlaneseq
      %v323 = vshrl.u32 %v322, 7
      %v324 = vsub.s32 0, %v323
      %v325 = vrot.slane %v320, %v324
      %vm327 = vcmask 31744
      %v329 = vsel %vm327, %v311, 0
      %v332 = vsel %vm327, %v312, 0
      %v335 = vsel %vm327, %v313, 0
      %v338 = vsel %vm327, %v314, 0
      %v341 = vsel %vm327, %v315, 0
      %v344 = vsel %vm327, %v316, 0
      %v347 = vsel %vm327, %v317, 0
      %v350 = vsel %vm327, %v318, 0
      %vm352 = vcmask 1043456
      %v354 = vsel %vm352, %v319, 0
      %356 = vmatprep.subr.mxu0 0.0
      %357 = vmatpush1.msra.mxu0 %v354
      %358 = vmatprep.subr.mxu0 0.0
      %359 = vmatpush1.msra.mxu0 0.0
      %360 = vmatprep.subr.mxu0 0.0
      %361 = vmatpush1.msra.mxu0 0.0
      %362 = vmatprep.subr.mxu0 0.0
      %363 = vmatpush1.msra.mxu0 0.0
      %364 = vmatprep.subr.mxu0 0.0
      %365 = vmatpush1.msra.mxu0 0.0
      %366 = vmatprep.subr.mxu0 0.0
      %367 = vmatpush1.msra.mxu0 0.0
      %368 = vmatprep.subr.mxu0 0.0
      %369 = vmatpush1.msra.mxu0 0.0
      %370 = vmatprep.subr.mxu0 0.0
      %371 = vmatpush1.msra.mxu0 0.0
      %372 = vmatprep.subr.mxu0 0.0
      %373 = vmatpush1.msra.mxu0 0.0
      %374 = vmatprep.subr.mxu0 0.0
      %375 = vmatpush1.msra.mxu0 0.0
      %376 = vmatprep.subr.mxu0 0.0
      %377 = vmatpush1.msra.mxu0 0.0
      %378 = vmatprep.subr.mxu0 0.0
      %379 = vmatpush1.msra.mxu0 0.0
      %380 = vmatprep.subr.mxu0 0.0
      %381 = vmatpush1.msra.mxu0 0.0
      %382 = vmatprep.subr.mxu0 0.0
      %383 = vmatpush1.msra.mxu0 0.0
      %384 = vmatprep.subr.mxu0 0.0
      %385 = vmatpush1.msra.mxu0 0.0
      %386 = vmatprep.subr.mxu0 0.0
      %387 = vmatpush1.msra.mxu0 0.0
      %388 = vmatprep.subr.mxu0 0.0
      %389 = vmatpush1.msra.mxu0 0.0
      %390 = vmatprep.subr.mxu0 0.0
      %391 = vmatpush1.msra.mxu0 0.0
      %392 = vmatprep.subr.mxu0 0.0
      %393 = vmatpush1.msra.mxu0 0.0
      %394 = vmatprep.subr.mxu0 0.0
      %395 = vmatpush1.msra.mxu0 0.0
      %396 = vmatprep.subr.mxu0 0.0
      %397 = vmatpush1.msra.mxu0 0.0
      %398 = vmatprep.subr.mxu0 0.0
      %399 = vmatpush1.msra.mxu0 0.0
      %400 = vmatprep.subr.mxu0 0.0
      %401 = vmatpush1.msra.mxu0 0.0
      %402 = vmatprep.subr.mxu0 0.0
      %403 = vmatpush1.msra.mxu0 0.0
      %404 = vmatprep.subr.mxu0 0.0
      %405 = vmatpush1.msra.mxu0 0.0
      %406 = vmatprep.subr.mxu0 0.0
      %407 = vmatpush1.msra.mxu0 0.0
      %408 = vmatprep.subr.mxu0 0.0
      %409 = vmatpush1.msra.mxu0 0.0
      %410 = vmatprep.subr.mxu0 0.0
      %411 = vmatpush1.msra.mxu0 0.0
      %412 = vmatprep.subr.mxu0 0.0
      %413 = vmatpush1.msra.mxu0 0.0
      %414 = vmatprep.subr.mxu0 0.0
      %415 = vmatpush1.msra.mxu0 0.0
      %416 = vmatprep.subr.mxu0 0.0
      %417 = vmatpush1.msra.mxu0 0.0
      %418 = vmatprep.subr.mxu0 0.0
      %419 = vmatpush1.msra.mxu0 0.0
      %420 = vmatprep.mubr.f32.mxu0 0.0
      %421 = vmatmul.mubr.f32.gmra.mrb[0].mxu0 %v329
      %v422 = vpop.f32.mrb[0].mxu0
      %v423 = vadd.f32 %v325, %v422
      %v424 = vpop.f32.mrb[0].mxu0
      %425 = vmatprep.mubr.f32.mxu0 0.0
      %426 = vmatmul.mubr.f32.gmra.mrb[0].mxu0 %v332
      %v427 = vpop.f32.mrb[0].mxu0
      %v428 = vadd.f32 %v325, %v427
      %v429 = vpop.f32.mrb[0].mxu0
      %430 = vmatprep.mubr.f32.mxu0 0.0
      %431 = vmatmul.mubr.f32.gmra.mrb[0].mxu0 %v335
      %v432 = vpop.f32.mrb[0].mxu0
      %v433 = vadd.f32 %v325, %v432
      %v434 = vpop.f32.mrb[0].mxu0
      %435 = vmatprep.mubr.f32.mxu0 0.0
      %436 = vmatmul.mubr.f32.gmra.mrb[0].mxu0 %v338
      %v437 = vpop.f32.mrb[0].mxu0
      %v438 = vadd.f32 %v325, %v437
      %v439 = vpop.f32.mrb[0].mxu0
      %440 = vmatprep.mubr.f32.mxu0 0.0
      %441 = vmatmul.mubr.f32.gmra.mrb[0].mxu0 %v341
      %v442 = vpop.f32.mrb[0].mxu0
      %v443 = vadd.f32 %v325, %v442
      %v444 = vpop.f32.mrb[0].mxu0
      %445 = vmatprep.mubr.f32.mxu0 0.0
      %446 = vmatmul.mubr.f32.gmra.mrb[0].mxu0 %v344
      %v447 = vpop.f32.mrb[0].mxu0
      %v448 = vadd.f32 %v325, %v447
      %v449 = vpop.f32.mrb[0].mxu0
      %450 = vmatprep.mubr.f32.mxu0 0.0
      %451 = vmatmul.mubr.f32.gmra.mrb[0].mxu0 %v347
      %v452 = vpop.f32.mrb[0].mxu0
      %v453 = vadd.f32 %v325, %v452
      %v454 = vpop.f32.mrb[0].mxu0
      %455 = vmatprep.mubr.f32.mxu0 0.0
      %456 = vmatmul.mubr.f32.gmra.mrb[0].mxu0 %v350
      %v457 = vpop.f32.mrb[0].mxu0
      %v458 = vadd.f32 %v325, %v457
      %v459 = vpop.f32.mrb[0].mxu0
      %460 = vdwg.mxu0
      %vm461 = vcmask 130048
      %v463 = vsel %vm461, 0.0, 0
      %465 = vmatprep.subr.mxu0 0.0
      %466 = vmatpush1.msra.mxu0 %v305
      %467 = vmatprep.subr.mxu0 0.0
      %468 = vmatpush1.msra.mxu0 %v306
      %469 = vmatprep.subr.mxu0 0.0
      %470 = vmatpush1.msra.mxu0 0.0
      %471 = vmatprep.subr.mxu0 0.0
      %472 = vmatpush1.msra.mxu0 0.0
      %473 = vmatprep.subr.mxu0 0.0
      %474 = vmatpush1.msra.mxu0 0.0
      %475 = vmatprep.subr.mxu0 0.0
      %476 = vmatpush1.msra.mxu0 0.0
      %477 = vmatprep.subr.mxu0 0.0
      %478 = vmatpush1.msra.mxu0 0.0
      %479 = vmatprep.subr.mxu0 0.0
      %480 = vmatpush1.msra.mxu0 0.0
      %481 = vmatprep.subr.mxu0 0.0
      %482 = vmatpush1.msra.mxu0 0.0
      %483 = vmatprep.subr.mxu0 0.0
      %484 = vmatpush1.msra.mxu0 0.0
      %485 = vmatprep.subr.mxu0 0.0
      %486 = vmatpush1.msra.mxu0 0.0
      %487 = vmatprep.subr.mxu0 0.0
      %488 = vmatpush1.msra.mxu0 0.0
      %489 = vmatprep.subr.mxu0 0.0
      %490 = vmatpush1.msra.mxu0 0.0
      %491 = vmatprep.subr.mxu0 0.0
      %492 = vmatpush1.msra.mxu0 0.0
      %493 = vmatprep.subr.mxu0 0.0
      %494 = vmatpush1.msra.mxu0 0.0
      %495 = vmatprep.subr.mxu0 0.0
      %496 = vmatpush1.msra.mxu0 0.0
      %497 = vmatprep.subr.mxu0 0.0
      %498 = vmatpush1.msra.mxu0 0.0
      %499 = vmatprep.subr.mxu0 0.0
      %500 = vmatpush1.msra.mxu0 0.0
      %501 = vmatprep.subr.mxu0 0.0
      %502 = vmatpush1.msra.mxu0 0.0
      %503 = vmatprep.subr.mxu0 0.0
      %504 = vmatpush1.msra.mxu0 0.0
      %505 = vmatprep.subr.mxu0 0.0
      %506 = vmatpush1.msra.mxu0 0.0
      %507 = vmatprep.subr.mxu0 0.0
      %508 = vmatpush1.msra.mxu0 0.0
      %509 = vmatprep.subr.mxu0 0.0
      %510 = vmatpush1.msra.mxu0 0.0
      %511 = vmatprep.subr.mxu0 0.0
      %512 = vmatpush1.msra.mxu0 0.0
      %513 = vmatprep.subr.mxu0 0.0
      %514 = vmatpush1.msra.mxu0 0.0
      %515 = vmatprep.subr.mxu0 0.0
      %516 = vmatpush1.msra.mxu0 0.0
      %517 = vmatprep.subr.mxu0 0.0
      %518 = vmatpush1.msra.mxu0 0.0
      %519 = vmatprep.subr.mxu0 0.0
      %520 = vmatpush1.msra.mxu0 0.0
      %521 = vmatprep.subr.mxu0 0.0
      %522 = vmatpush1.msra.mxu0 0.0
      %523 = vmatprep.subr.mxu0 0.0
      %524 = vmatpush1.msra.mxu0 0.0
      %525 = vmatprep.subr.mxu0 0.0
      %526 = vmatpush1.msra.mxu0 0.0
      %527 = vmatprep.subr.mxu0 0.0
      %528 = vmatpush1.msra.mxu0 0.0
      %529 = vmatprep.mubr.f32.mxu0 0.0
      %530 = vmatmul.mubr.f32.gmra.mrb[0].mxu0 %v463
      %v531 = vpop.f32.mrb[0].mxu0
      %v532 = vadd.f32 0.0, %v531
      %v533 = vpop.f32.mrb[0].mxu0
      %534 = vdwg.mxu0
      %v535 = vadd.f32 %v423, %v532
      %v536 = vxor.u32 %v535, 2147483648
      %v537 = vmul.f32 %v536, 1.442695
      %v538 = vpow.pop %v537
      %v539 = vadd.f32 %v538, 1.0
      %v540 = vrcp.pop %v539
      %v541 = vmul.f32 1.0, %v540
      %v542 = vtanh.pop %v535
      %v543 = vmul.f32 %v541, 0.0
      %545 = vrot.lane.b32.xlu0 %v542, 80
      %v546 = vpop.permute.xlu0 %545
      %v548 = vmul.f32 %v541, %v546
      %550 = vrot.lane.b32.xlu0 %v548, 16
      %v551 = vpop.permute.xlu0 %550
      %v553 = vadd.f32 %v543, %v551
      %v554 = vtanh.pop %v553
      %556 = vrot.lane.b32.xlu0 %v554, 16
      %v557 = vpop.permute.xlu0 %556
      %v559 = vmul.f32 %v541, %v557
      %561 = vrot.lane.b32.xlu0 %v559, 96
      %v562 = vpop.permute.xlu0 %561
      %v563 = vsel %vm461, %v562, 0
      %565 = vmatprep.subr.mxu0 0.0
      %566 = vmatpush1.msra.mxu0 %v305
      %567 = vmatprep.subr.mxu0 0.0
      %568 = vmatpush1.msra.mxu0 %v306
      %569 = vmatprep.subr.mxu0 0.0
      %570 = vmatpush1.msra.mxu0 0.0
      %571 = vmatprep.subr.mxu0 0.0
      %572 = vmatpush1.msra.mxu0 0.0
      %573 = vmatprep.subr.mxu0 0.0
      %574 = vmatpush1.msra.mxu0 0.0
      %575 = vmatprep.subr.mxu0 0.0
      %576 = vmatpush1.msra.mxu0 0.0
      %577 = vmatprep.subr.mxu0 0.0
      %578 = vmatpush1.msra.mxu0 0.0
      %579 = vmatprep.subr.mxu0 0.0
      %580 = vmatpush1.msra.mxu0 0.0
      %581 = vmatprep.subr.mxu0 0.0
      %582 = vmatpush1.msra.mxu0 0.0
      %583 = vmatprep.subr.mxu0 0.0
      %584 = vmatpush1.msra.mxu0 0.0
      %585 = vmatprep.subr.mxu0 0.0
      %586 = vmatpush1.msra.mxu0 0.0
      %587 = vmatprep.subr.mxu0 0.0
      %588 = vmatpush1.msra.mxu0 0.0
      %589 = vmatprep.subr.mxu0 0.0
      %590 = vmatpush1.msra.mxu0 0.0
      %591 = vmatprep.subr.mxu0 0.0
      %592 = vmatpush1.msra.mxu0 0.0
      %593 = vmatprep.subr.mxu0 0.0
      %594 = vmatpush1.msra.mxu0 0.0
      %595 = vmatprep.subr.mxu0 0.0
      %596 = vmatpush1.msra.mxu0 0.0
      %597 = vmatprep.subr.mxu0 0.0
      %598 = vmatpush1.msra.mxu0 0.0
      %599 = vmatprep.subr.mxu0 0.0
      %600 = vmatpush1.msra.mxu0 0.0
      %601 = vmatprep.subr.mxu0 0.0
      %602 = vmatpush1.msra.mxu0 0.0
      %603 = vmatprep.subr.mxu0 0.0
      %604 = vmatpush1.msra.mxu0 0.0
      %605 = vmatprep.subr.mxu0 0.0
      %606 = vmatpush1.msra.mxu0 0.0
      %607 = vmatprep.subr.mxu0 0.0
      %608 = vmatpush1.msra.mxu0 0.0
      %609 = vmatprep.subr.mxu0 0.0
      %610 = vmatpush1.msra.mxu0 0.0
      %611 = vmatprep.subr.mxu0 0.0
      %612 = vmatpush1.msra.mxu0 0.0
      %613 = vmatprep.subr.mxu0 0.0
      %614 = vmatpush1.msra.mxu0 0.0
      %615 = vmatprep.subr.mxu0 0.0
      %616 = vmatpush1.msra.mxu0 0.0
      %617 = vmatprep.subr.mxu0 0.0
      %618 = vmatpush1.msra.mxu0 0.0
      %619 = vmatprep.subr.mxu0 0.0
      %620 = vmatpush1.msra.mxu0 0.0
      %621 = vmatprep.subr.mxu0 0.0
      %622 = vmatpush1.msra.mxu0 0.0
      %623 = vmatprep.subr.mxu0 0.0
      %624 = vmatpush1.msra.mxu0 0.0
      %625 = vmatprep.subr.mxu0 0.0
      %626 = vmatpush1.msra.mxu0 0.0
      %627 = vmatprep.subr.mxu0 0.0
      %628 = vmatpush1.msra.mxu0 0.0
      %629 = vmatprep.mubr.f32.mxu0 0.0
      %630 = vmatmul.mubr.f32.gmra.mrb[0].mxu0 %v563
      %v631 = vpop.f32.mrb[0].mxu0
      %v632 = vadd.f32 0.0, %v631
      %v633 = vpop.f32.mrb[0].mxu0
      %634 = vdwg.mxu0
      %v635 = vadd.f32 %v428, %v632
      %v636 = vxor.u32 %v635, 2147483648
      %v637 = vmul.f32 %v636, 1.442695
      %v638 = vpow.pop %v637
      %v639 = vadd.f32 %v638, 1.0
      %v640 = vrcp.pop %v639
      %v641 = vmul.f32 1.0, %v640
      %v642 = vtanh.pop %v635
      %v643 = vmul.f32 %v641, %v553
      %645 = vrot.lane.b32.xlu0 %v642, 80
      %v646 = vpop.permute.xlu0 %645
      %v648 = vmul.f32 %v641, %v646
      %650 = vrot.lane.b32.xlu0 %v648, 16
      %v651 = vpop.permute.xlu0 %650
      %v653 = vadd.f32 %v643, %v651
      %v654 = vtanh.pop %v653
      %656 = vrot.lane.b32.xlu0 %v654, 16
      %v657 = vpop.permute.xlu0 %656
      %v659 = vmul.f32 %v641, %v657
      %661 = vrot.lane.b32.xlu0 %v659, 96
      %v662 = vpop.permute.xlu0 %661
      %v663 = vsel %vm461, %v662, 0
      %665 = vmatprep.subr.mxu0 0.0
      %666 = vmatpush1.msra.mxu0 %v305
      %667 = vmatprep.subr.mxu0 0.0
      %668 = vmatpush1.msra.mxu0 %v306
      %669 = vmatprep.subr.mxu0 0.0
      %670 = vmatpush1.msra.mxu0 0.0
      %671 = vmatprep.subr.mxu0 0.0
      %672 = vmatpush1.msra.mxu0 0.0
      %673 = vmatprep.subr.mxu0 0.0
      %674 = vmatpush1.msra.mxu0 0.0
      %675 = vmatprep.subr.mxu0 0.0
      %676 = vmatpush1.msra.mxu0 0.0
      %677 = vmatprep.subr.mxu0 0.0
      %678 = vmatpush1.msra.mxu0 0.0
      %679 = vmatprep.subr.mxu0 0.0
      %680 = vmatpush1.msra.mxu0 0.0
      %681 = vmatprep.subr.mxu0 0.0
      %682 = vmatpush1.msra.mxu0 0.0
      %683 = vmatprep.subr.mxu0 0.0
      %684 = vmatpush1.msra.mxu0 0.0
      %685 = vmatprep.subr.mxu0 0.0
      %686 = vmatpush1.msra.mxu0 0.0
      %687 = vmatprep.subr.mxu0 0.0
      %688 = vmatpush1.msra.mxu0 0.0
      %689 = vmatprep.subr.mxu0 0.0
      %690 = vmatpush1.msra.mxu0 0.0
      %691 = vmatprep.subr.mxu0 0.0
      %692 = vmatpush1.msra.mxu0 0.0
      %693 = vmatprep.subr.mxu0 0.0
      %694 = vmatpush1.msra.mxu0 0.0
      %695 = vmatprep.subr.mxu0 0.0
      %696 = vmatpush1.msra.mxu0 0.0
      %697 = vmatprep.subr.mxu0 0.0
      %698 = vmatpush1.msra.mxu0 0.0
      %699 = vmatprep.subr.mxu0 0.0
      %700 = vmatpush1.msra.mxu0 0.0
      %701 = vmatprep.subr.mxu0 0.0
      %702 = vmatpush1.msra.mxu0 0.0
      %703 = vmatprep.subr.mxu0 0.0
      %704 = vmatpush1.msra.mxu0 0.0
      %705 = vmatprep.subr.mxu0 0.0
      %706 = vmatpush1.msra.mxu0 0.0
      %707 = vmatprep.subr.mxu0 0.0
      %708 = vmatpush1.msra.mxu0 0.0
      %709 = vmatprep.subr.mxu0 0.0
      %710 = vmatpush1.msra.mxu0 0.0
      %711 = vmatprep.subr.mxu0 0.0
      %712 = vmatpush1.msra.mxu0 0.0
      %713 = vmatprep.subr.mxu0 0.0
      %714 = vmatpush1.msra.mxu0 0.0
      %715 = vmatprep.subr.mxu0 0.0
      %716 = vmatpush1.msra.mxu0 0.0
      %717 = vmatprep.subr.mxu0 0.0
      %718 = vmatpush1.msra.mxu0 0.0
      %719 = vmatprep.subr.mxu0 0.0
      %720 = vmatpush1.msra.mxu0 0.0
      %721 = vmatprep.subr.mxu0 0.0
      %722 = vmatpush1.msra.mxu0 0.0
      %723 = vmatprep.subr.mxu0 0.0
      %724 = vmatpush1.msra.mxu0 0.0
      %725 = vmatprep.subr.mxu0 0.0
      %726 = vmatpush1.msra.mxu0 0.0
      %727 = vmatprep.subr.mxu0 0.0
      %728 = vmatpush1.msra.mxu0 0.0
      %729 = vmatprep.mubr.f32.mxu0 0.0
      %730 = vmatmul.mubr.f32.gmra.mrb[0].mxu0 %v663
      %v731 = vpop.f32.mrb[0].mxu0
      %v732 = vadd.f32 0.0, %v731
      %v733 = vpop.f32.mrb[0].mxu0
      %734 = vdwg.mxu0
      %v735 = vadd.f32 %v433, %v732
      %v736 = vxor.u32 %v735, 2147483648
      %v737 = vmul.f32 %v736, 1.442695
      %v738 = vpow.pop %v737
      %v739 = vadd.f32 %v738, 1.0
      %v740 = vrcp.pop %v739
      %v741 = vmul.f32 1.0, %v740
      %v742 = vtanh.pop %v735
      %v743 = vmul.f32 %v741, %v653
      %745 = vrot.lane.b32.xlu0 %v742, 80
      %v746 = vpop.permute.xlu0 %745
      %v748 = vmul.f32 %v741, %v746
      %750 = vrot.lane.b32.xlu0 %v748, 16
      %v751 = vpop.permute.xlu0 %750
      %v753 = vadd.f32 %v743, %v751
      %v754 = vtanh.pop %v753
      %756 = vrot.lane.b32.xlu0 %v754, 16
      %v757 = vpop.permute.xlu0 %756
      %v759 = vmul.f32 %v741, %v757
      %761 = vrot.lane.b32.xlu0 %v759, 96
      %v762 = vpop.permute.xlu0 %761
      %v763 = vsel %vm461, %v762, 0
      %765 = vmatprep.subr.mxu0 0.0
      %766 = vmatpush1.msra.mxu0 %v305
      %767 = vmatprep.subr.mxu0 0.0
      %768 = vmatpush1.msra.mxu0 %v306
      %769 = vmatprep.subr.mxu0 0.0
      %770 = vmatpush1.msra.mxu0 0.0
      %771 = vmatprep.subr.mxu0 0.0
      %772 = vmatpush1.msra.mxu0 0.0
      %773 = vmatprep.subr.mxu0 0.0
      %774 = vmatpush1.msra.mxu0 0.0
      %775 = vmatprep.subr.mxu0 0.0
      %776 = vmatpush1.msra.mxu0 0.0
      %777 = vmatprep.subr.mxu0 0.0
      %778 = vmatpush1.msra.mxu0 0.0
      %779 = vmatprep.subr.mxu0 0.0
      %780 = vmatpush1.msra.mxu0 0.0
      %781 = vmatprep.subr.mxu0 0.0
      %782 = vmatpush1.msra.mxu0 0.0
      %783 = vmatprep.subr.mxu0 0.0
      %784 = vmatpush1.msra.mxu0 0.0
      %785 = vmatprep.subr.mxu0 0.0
      %786 = vmatpush1.msra.mxu0 0.0
      %787 = vmatprep.subr.mxu0 0.0
      %788 = vmatpush1.msra.mxu0 0.0
      %789 = vmatprep.subr.mxu0 0.0
      %790 = vmatpush1.msra.mxu0 0.0
      %791 = vmatprep.subr.mxu0 0.0
      %792 = vmatpush1.msra.mxu0 0.0
      %793 = vmatprep.subr.mxu0 0.0
      %794 = vmatpush1.msra.mxu0 0.0
      %795 = vmatprep.subr.mxu0 0.0
      %796 = vmatpush1.msra.mxu0 0.0
      %797 = vmatprep.subr.mxu0 0.0
      %798 = vmatpush1.msra.mxu0 0.0
      %799 = vmatprep.subr.mxu0 0.0
      %800 = vmatpush1.msra.mxu0 0.0
      %801 = vmatprep.subr.mxu0 0.0
      %802 = vmatpush1.msra.mxu0 0.0
      %803 = vmatprep.subr.mxu0 0.0
      %804 = vmatpush1.msra.mxu0 0.0
      %805 = vmatprep.subr.mxu0 0.0
      %806 = vmatpush1.msra.mxu0 0.0
      %807 = vmatprep.subr.mxu0 0.0
      %808 = vmatpush1.msra.mxu0 0.0
      %809 = vmatprep.subr.mxu0 0.0
      %810 = vmatpush1.msra.mxu0 0.0
      %811 = vmatprep.subr.mxu0 0.0
      %812 = vmatpush1.msra.mxu0 0.0
      %813 = vmatprep.subr.mxu0 0.0
      %814 = vmatpush1.msra.mxu0 0.0
      %815 = vmatprep.subr.mxu0 0.0
      %816 = vmatpush1.msra.mxu0 0.0
      %817 = vmatprep.subr.mxu0 0.0
      %818 = vmatpush1.msra.mxu0 0.0
      %819 = vmatprep.subr.mxu0 0.0
      %820 = vmatpush1.msra.mxu0 0.0
      %821 = vmatprep.subr.mxu0 0.0
      %822 = vmatpush1.msra.mxu0 0.0
      %823 = vmatprep.subr.mxu0 0.0
      %824 = vmatpush1.msra.mxu0 0.0
      %825 = vmatprep.subr.mxu0 0.0
      %826 = vmatpush1.msra.mxu0 0.0
      %827 = vmatprep.subr.mxu0 0.0
      %828 = vmatpush1.msra.mxu0 0.0
      %829 = vmatprep.mubr.f32.mxu0 0.0
      %830 = vmatmul.mubr.f32.gmra.mrb[0].mxu0 %v763
      %v831 = vpop.f32.mrb[0].mxu0
      %v832 = vadd.f32 0.0, %v831
      %v833 = vpop.f32.mrb[0].mxu0
      %834 = vdwg.mxu0
      %v835 = vadd.f32 %v438, %v832
      %v836 = vxor.u32 %v835, 2147483648
      %v837 = vmul.f32 %v836, 1.442695
      %v838 = vpow.pop %v837
      %v839 = vadd.f32 %v838, 1.0
      %v840 = vrcp.pop %v839
      %v841 = vmul.f32 1.0, %v840
      %v842 = vtanh.pop %v835
      %v843 = vmul.f32 %v841, %v753
      %845 = vrot.lane.b32.xlu0 %v842, 80
      %v846 = vpop.permute.xlu0 %845
      %v848 = vmul.f32 %v841, %v846
      %850 = vrot.lane.b32.xlu0 %v848, 16
      %v851 = vpop.permute.xlu0 %850
      %v853 = vadd.f32 %v843, %v851
      %v854 = vtanh.pop %v853
      %856 = vrot.lane.b32.xlu0 %v854, 16
      %v857 = vpop.permute.xlu0 %856
      %v859 = vmul.f32 %v841, %v857
      %861 = vrot.lane.b32.xlu0 %v859, 96
      %v862 = vpop.permute.xlu0 %861
      %v863 = vsel %vm461, %v862, 0
      %865 = vmatprep.subr.mxu0 0.0
      %866 = vmatpush1.msra.mxu0 %v305
      %867 = vmatprep.subr.mxu0 0.0
      %868 = vmatpush1.msra.mxu0 %v306
      %869 = vmatprep.subr.mxu0 0.0
      %870 = vmatpush1.msra.mxu0 0.0
      %871 = vmatprep.subr.mxu0 0.0
      %872 = vmatpush1.msra.mxu0 0.0
      %873 = vmatprep.subr.mxu0 0.0
      %874 = vmatpush1.msra.mxu0 0.0
      %875 = vmatprep.subr.mxu0 0.0
      %876 = vmatpush1.msra.mxu0 0.0
      %877 = vmatprep.subr.mxu0 0.0
      %878 = vmatpush1.msra.mxu0 0.0
      %879 = vmatprep.subr.mxu0 0.0
      %880 = vmatpush1.msra.mxu0 0.0
      %881 = vmatprep.subr.mxu0 0.0
      %882 = vmatpush1.msra.mxu0 0.0
      %883 = vmatprep.subr.mxu0 0.0
      %884 = vmatpush1.msra.mxu0 0.0
      %885 = vmatprep.subr.mxu0 0.0
      %886 = vmatpush1.msra.mxu0 0.0
      %887 = vmatprep.subr.mxu0 0.0
      %888 = vmatpush1.msra.mxu0 0.0
      %889 = vmatprep.subr.mxu0 0.0
      %890 = vmatpush1.msra.mxu0 0.0
      %891 = vmatprep.subr.mxu0 0.0
      %892 = vmatpush1.msra.mxu0 0.0
      %893 = vmatprep.subr.mxu0 0.0
      %894 = vmatpush1.msra.mxu0 0.0
      %895 = vmatprep.subr.mxu0 0.0
      %896 = vmatpush1.msra.mxu0 0.0
      %897 = vmatprep.subr.mxu0 0.0
      %898 = vmatpush1.msra.mxu0 0.0
      %899 = vmatprep.subr.mxu0 0.0
      %900 = vmatpush1.msra.mxu0 0.0
      %901 = vmatprep.subr.mxu0 0.0
      %902 = vmatpush1.msra.mxu0 0.0
      %903 = vmatprep.subr.mxu0 0.0
      %904 = vmatpush1.msra.mxu0 0.0
      %905 = vmatprep.subr.mxu0 0.0
      %906 = vmatpush1.msra.mxu0 0.0
      %907 = vmatprep.subr.mxu0 0.0
      %908 = vmatpush1.msra.mxu0 0.0
      %909 = vmatprep.subr.mxu0 0.0
      %910 = vmatpush1.msra.mxu0 0.0
      %911 = vmatprep.subr.mxu0 0.0
      %912 = vmatpush1.msra.mxu0 0.0
      %913 = vmatprep.subr.mxu0 0.0
      %914 = vmatpush1.msra.mxu0 0.0
      %915 = vmatprep.subr.mxu0 0.0
      %916 = vmatpush1.msra.mxu0 0.0
      %917 = vmatprep.subr.mxu0 0.0
      %918 = vmatpush1.msra.mxu0 0.0
      %919 = vmatprep.subr.mxu0 0.0
      %920 = vmatpush1.msra.mxu0 0.0
      %921 = vmatprep.subr.mxu0 0.0
      %922 = vmatpush1.msra.mxu0 0.0
      %923 = vmatprep.subr.mxu0 0.0
      %924 = vmatpush1.msra.mxu0 0.0
      %925 = vmatprep.subr.mxu0 0.0
      %926 = vmatpush1.msra.mxu0 0.0
      %927 = vmatprep.subr.mxu0 0.0
      %928 = vmatpush1.msra.mxu0 0.0
      %929 = vmatprep.mubr.f32.mxu0 0.0
      %930 = vmatmul.mubr.f32.gmra.mrb[0].mxu0 %v863
      %v931 = vpop.f32.mrb[0].mxu0
      %v932 = vadd.f32 0.0, %v931
      %v933 = vpop.f32.mrb[0].mxu0
      %934 = vdwg.mxu0
      %v935 = vadd.f32 %v443, %v932
      %v936 = vxor.u32 %v935, 2147483648
      %v937 = vmul.f32 %v936, 1.442695
      %v938 = vpow.pop %v937
      %v939 = vadd.f32 %v938, 1.0
      %v940 = vrcp.pop %v939
      %v941 = vmul.f32 1.0, %v940
      %v942 = vtanh.pop %v935
      %v943 = vmul.f32 %v941, %v853
      %945 = vrot.lane.b32.xlu0 %v942, 80
      %v946 = vpop.permute.xlu0 %945
      %v948 = vmul.f32 %v941, %v946
      %950 = vrot.lane.b32.xlu0 %v948, 16
      %v951 = vpop.permute.xlu0 %950
      %v953 = vadd.f32 %v943, %v951
      %v954 = vtanh.pop %v953
      %956 = vrot.lane.b32.xlu0 %v954, 16
      %v957 = vpop.permute.xlu0 %956
      %v959 = vmul.f32 %v941, %v957
      %961 = vrot.lane.b32.xlu0 %v959, 96
      %v962 = vpop.permute.xlu0 %961
      %v963 = vsel %vm461, %v962, 0
      %965 = vmatprep.subr.mxu0 0.0
      %966 = vmatpush1.msra.mxu0 %v305
      %967 = vmatprep.subr.mxu0 0.0
      %968 = vmatpush1.msra.mxu0 %v306
      %969 = vmatprep.subr.mxu0 0.0
      %970 = vmatpush1.msra.mxu0 0.0
      %971 = vmatprep.subr.mxu0 0.0
      %972 = vmatpush1.msra.mxu0 0.0
      %973 = vmatprep.subr.mxu0 0.0
      %974 = vmatpush1.msra.mxu0 0.0
      %975 = vmatprep.subr.mxu0 0.0
      %976 = vmatpush1.msra.mxu0 0.0
      %977 = vmatprep.subr.mxu0 0.0
      %978 = vmatpush1.msra.mxu0 0.0
      %979 = vmatprep.subr.mxu0 0.0
      %980 = vmatpush1.msra.mxu0 0.0
      %981 = vmatprep.subr.mxu0 0.0
      %982 = vmatpush1.msra.mxu0 0.0
      %983 = vmatprep.subr.mxu0 0.0
      %984 = vmatpush1.msra.mxu0 0.0
      %985 = vmatprep.subr.mxu0 0.0
      %986 = vmatpush1.msra.mxu0 0.0
      %987 = vmatprep.subr.mxu0 0.0
      %988 = vmatpush1.msra.mxu0 0.0
      %989 = vmatprep.subr.mxu0 0.0
      %990 = vmatpush1.msra.mxu0 0.0
      %991 = vmatprep.subr.mxu0 0.0
      %992 = vmatpush1.msra.mxu0 0.0
      %993 = vmatprep.subr.mxu0 0.0
      %994 = vmatpush1.msra.mxu0 0.0
      %995 = vmatprep.subr.mxu0 0.0
      %996 = vmatpush1.msra.mxu0 0.0
      %997 = vmatprep.subr.mxu0 0.0
      %998 = vmatpush1.msra.mxu0 0.0
      %999 = vmatprep.subr.mxu0 0.0
      %1000 = vmatpush1.msra.mxu0 0.0
      %1001 = vmatprep.subr.mxu0 0.0
      %1002 = vmatpush1.msra.mxu0 0.0
      %1003 = vmatprep.subr.mxu0 0.0
      %1004 = vmatpush1.msra.mxu0 0.0
      %1005 = vmatprep.subr.mxu0 0.0
      %1006 = vmatpush1.msra.mxu0 0.0
      %1007 = vmatprep.subr.mxu0 0.0
      %1008 = vmatpush1.msra.mxu0 0.0
      %1009 = vmatprep.subr.mxu0 0.0
      %1010 = vmatpush1.msra.mxu0 0.0
      %1011 = vmatprep.subr.mxu0 0.0
      %1012 = vmatpush1.msra.mxu0 0.0
      %1013 = vmatprep.subr.mxu0 0.0
      %1014 = vmatpush1.msra.mxu0 0.0
      %1015 = vmatprep.subr.mxu0 0.0
      %1016 = vmatpush1.msra.mxu0 0.0
      %1017 = vmatprep.subr.mxu0 0.0
      %1018 = vmatpush1.msra.mxu0 0.0
      %1019 = vmatprep.subr.mxu0 0.0
      %1020 = vmatpush1.msra.mxu0 0.0
      %1021 = vmatprep.subr.mxu0 0.0
      %1022 = vmatpush1.msra.mxu0 0.0
      %1023 = vmatprep.subr.mxu0 0.0
      %1024 = vmatpush1.msra.mxu0 0.0
      %1025 = vmatprep.subr.mxu0 0.0
      %1026 = vmatpush1.msra.mxu0 0.0
      %1027 = vmatprep.subr.mxu0 0.0
      %1028 = vmatpush1.msra.mxu0 0.0
      %1029 = vmatprep.mubr.f32.mxu0 0.0
      %1030 = vmatmul.mubr.f32.gmra.mrb[0].mxu0 %v963
      %v1031 = vpop.f32.mrb[0].mxu0
      %v1032 = vadd.f32 0.0, %v1031
      %v1033 = vpop.f32.mrb[0].mxu0
      %1034 = vdwg.mxu0
      %v1035 = vadd.f32 %v448, %v1032
      %v1036 = vxor.u32 %v1035, 2147483648
      %v1037 = vmul.f32 %v1036, 1.442695
      %v1038 = vpow.pop %v1037
      %v1039 = vadd.f32 %v1038, 1.0
      %v1040 = vrcp.pop %v1039
      %v1041 = vmul.f32 1.0, %v1040
      %v1042 = vtanh.pop %v1035
      %v1043 = vmul.f32 %v1041, %v953
      %1045 = vrot.lane.b32.xlu0 %v1042, 80
      %v1046 = vpop.permute.xlu0 %1045
      %v1048 = vmul.f32 %v1041, %v1046
      %1050 = vrot.lane.b32.xlu0 %v1048, 16
      %v1051 = vpop.permute.xlu0 %1050
      %v1053 = vadd.f32 %v1043, %v1051
      %v1054 = vtanh.pop %v1053
      %1056 = vrot.lane.b32.xlu0 %v1054, 16
      %v1057 = vpop.permute.xlu0 %1056
      %v1059 = vmul.f32 %v1041, %v1057
      %1061 = vrot.lane.b32.xlu0 %v1059, 96
      %v1062 = vpop.permute.xlu0 %1061
      %v1063 = vsel %vm461, %v1062, 0
      %1065 = vmatprep.subr.mxu0 0.0
      %1066 = vmatpush1.msra.mxu0 %v305
      %1067 = vmatprep.subr.mxu0 0.0
      %1068 = vmatpush1.msra.mxu0 %v306
      %1069 = vmatprep.subr.mxu0 0.0
      %1070 = vmatpush1.msra.mxu0 0.0
      %1071 = vmatprep.subr.mxu0 0.0
      %1072 = vmatpush1.msra.mxu0 0.0
      %1073 = vmatprep.subr.mxu0 0.0
      %1074 = vmatpush1.msra.mxu0 0.0
      %1075 = vmatprep.subr.mxu0 0.0
      %1076 = vmatpush1.msra.mxu0 0.0
      %1077 = vmatprep.subr.mxu0 0.0
      %1078 = vmatpush1.msra.mxu0 0.0
      %1079 = vmatprep.subr.mxu0 0.0
      %1080 = vmatpush1.msra.mxu0 0.0
      %1081 = vmatprep.subr.mxu0 0.0
      %1082 = vmatpush1.msra.mxu0 0.0
      %1083 = vmatprep.subr.mxu0 0.0
      %1084 = vmatpush1.msra.mxu0 0.0
      %1085 = vmatprep.subr.mxu0 0.0
      %1086 = vmatpush1.msra.mxu0 0.0
      %1087 = vmatprep.subr.mxu0 0.0
      %1088 = vmatpush1.msra.mxu0 0.0
      %1089 = vmatprep.subr.mxu0 0.0
      %1090 = vmatpush1.msra.mxu0 0.0
      %1091 = vmatprep.subr.mxu0 0.0
      %1092 = vmatpush1.msra.mxu0 0.0
      %1093 = vmatprep.subr.mxu0 0.0
      %1094 = vmatpush1.msra.mxu0 0.0
      %1095 = vmatprep.subr.mxu0 0.0
      %1096 = vmatpush1.msra.mxu0 0.0
      %1097 = vmatprep.subr.mxu0 0.0
      %1098 = vmatpush1.msra.mxu0 0.0
      %1099 = vmatprep.subr.mxu0 0.0
      %1100 = vmatpush1.msra.mxu0 0.0
      %1101 = vmatprep.subr.mxu0 0.0
      %1102 = vmatpush1.msra.mxu0 0.0
      %1103 = vmatprep.subr.mxu0 0.0
      %1104 = vmatpush1.msra.mxu0 0.0
      %1105 = vmatprep.subr.mxu0 0.0
      %1106 = vmatpush1.msra.mxu0 0.0
      %1107 = vmatprep.subr.mxu0 0.0
      %1108 = vmatpush1.msra.mxu0 0.0
      %1109 = vmatprep.subr.mxu0 0.0
      %1110 = vmatpush1.msra.mxu0 0.0
      %1111 = vmatprep.subr.mxu0 0.0
      %1112 = vmatpush1.msra.mxu0 0.0
      %1113 = vmatprep.subr.mxu0 0.0
      %1114 = vmatpush1.msra.mxu0 0.0
      %1115 = vmatprep.subr.mxu0 0.0
      %1116 = vmatpush1.msra.mxu0 0.0
      %1117 = vmatprep.subr.mxu0 0.0
      %1118 = vmatpush1.msra.mxu0 0.0
      %1119 = vmatprep.subr.mxu0 0.0
      %1120 = vmatpush1.msra.mxu0 0.0
      %1121 = vmatprep.subr.mxu0 0.0
      %1122 = vmatpush1.msra.mxu0 0.0
      %1123 = vmatprep.subr.mxu0 0.0
      %1124 = vmatpush1.msra.mxu0 0.0
      %1125 = vmatprep.subr.mxu0 0.0
      %1126 = vmatpush1.msra.mxu0 0.0
      %1127 = vmatprep.subr.mxu0 0.0
      %1128 = vmatpush1.msra.mxu0 0.0
      %1129 = vmatprep.mubr.f32.mxu0 0.0
      %1130 = vmatmul.mubr.f32.gmra.mrb[0].mxu0 %v1063
      %v1131 = vpop.f32.mrb[0].mxu0
      %v1132 = vadd.f32 0.0, %v1131
      %v1133 = vpop.f32.mrb[0].mxu0
      %1134 = vdwg.mxu0
      %v1135 = vadd.f32 %v453, %v1132
      %v1136 = vxor.u32 %v1135, 2147483648
      %v1137 = vmul.f32 %v1136, 1.442695
      %v1138 = vpow.pop %v1137
      %v1139 = vadd.f32 %v1138, 1.0
      %v1140 = vrcp.pop %v1139
      %v1141 = vmul.f32 1.0, %v1140
      %v1142 = vtanh.pop %v1135
      %v1143 = vmul.f32 %v1141, %v1053
      %1145 = vrot.lane.b32.xlu0 %v1142, 80
      %v1146 = vpop.permute.xlu0 %1145
      %v1148 = vmul.f32 %v1141, %v1146
      %1150 = vrot.lane.b32.xlu0 %v1148, 16
      %v1151 = vpop.permute.xlu0 %1150
      %v1153 = vadd.f32 %v1143, %v1151
      %v1154 = vtanh.pop %v1153
      %1156 = vrot.lane.b32.xlu0 %v1154, 16
      %v1157 = vpop.permute.xlu0 %1156
      %v1159 = vmul.f32 %v1141, %v1157
      %1161 = vrot.lane.b32.xlu0 %v1159, 96
      %v1162 = vpop.permute.xlu0 %1161
      %v1163 = vsel %vm461, %v1162, 0
      %1165 = vmatprep.subr.mxu0 0.0
      %1166 = vmatpush1.msra.mxu0 %v305
      %1167 = vmatprep.subr.mxu0 0.0
      %1168 = vmatpush1.msra.mxu0 %v306
      %1169 = vmatprep.subr.mxu0 0.0
      %1170 = vmatpush1.msra.mxu0 0.0
      %1171 = vmatprep.subr.mxu0 0.0
      %1172 = vmatpush1.msra.mxu0 0.0
      %1173 = vmatprep.subr.mxu0 0.0
      %1174 = vmatpush1.msra.mxu0 0.0
      %1175 = vmatprep.subr.mxu0 0.0
      %1176 = vmatpush1.msra.mxu0 0.0
      %1177 = vmatprep.subr.mxu0 0.0
      %1178 = vmatpush1.msra.mxu0 0.0
      %1179 = vmatprep.subr.mxu0 0.0
      %1180 = vmatpush1.msra.mxu0 0.0
      %1181 = vmatprep.subr.mxu0 0.0
      %1182 = vmatpush1.msra.mxu0 0.0
      %1183 = vmatprep.subr.mxu0 0.0
      %1184 = vmatpush1.msra.mxu0 0.0
      %1185 = vmatprep.subr.mxu0 0.0
      %1186 = vmatpush1.msra.mxu0 0.0
      %1187 = vmatprep.subr.mxu0 0.0
      %1188 = vmatpush1.msra.mxu0 0.0
      %1189 = vmatprep.subr.mxu0 0.0
      %1190 = vmatpush1.msra.mxu0 0.0
      %1191 = vmatprep.subr.mxu0 0.0
      %1192 = vmatpush1.msra.mxu0 0.0
      %1193 = vmatprep.subr.mxu0 0.0
      %1194 = vmatpush1.msra.mxu0 0.0
      %1195 = vmatprep.subr.mxu0 0.0
      %1196 = vmatpush1.msra.mxu0 0.0
      %1197 = vmatprep.subr.mxu0 0.0
      %1198 = vmatpush1.msra.mxu0 0.0
      %1199 = vmatprep.subr.mxu0 0.0
      %1200 = vmatpush1.msra.mxu0 0.0
      %1201 = vmatprep.subr.mxu0 0.0
      %1202 = vmatpush1.msra.mxu0 0.0
      %1203 = vmatprep.subr.mxu0 0.0
      %1204 = vmatpush1.msra.mxu0 0.0
      %1205 = vmatprep.subr.mxu0 0.0
      %1206 = vmatpush1.msra.mxu0 0.0
      %1207 = vmatprep.subr.mxu0 0.0
      %1208 = vmatpush1.msra.mxu0 0.0
      %1209 = vmatprep.subr.mxu0 0.0
      %1210 = vmatpush1.msra.mxu0 0.0
      %1211 = vmatprep.subr.mxu0 0.0
      %1212 = vmatpush1.msra.mxu0 0.0
      %1213 = vmatprep.subr.mxu0 0.0
      %1214 = vmatpush1.msra.mxu0 0.0
      %1215 = vmatprep.subr.mxu0 0.0
      %1216 = vmatpush1.msra.mxu0 0.0
      %1217 = vmatprep.subr.mxu0 0.0
      %1218 = vmatpush1.msra.mxu0 0.0
      %1219 = vmatprep.subr.mxu0 0.0
      %1220 = vmatpush1.msra.mxu0 0.0
      %1221 = vmatprep.subr.mxu0 0.0
      %1222 = vmatpush1.msra.mxu0 0.0
      %1223 = vmatprep.subr.mxu0 0.0
      %1224 = vmatpush1.msra.mxu0 0.0
      %1225 = vmatprep.subr.mxu0 0.0
      %1226 = vmatpush1.msra.mxu0 0.0
      %1227 = vmatprep.subr.mxu0 0.0
      %1228 = vmatpush1.msra.mxu0 0.0
      %1229 = vmatprep.mubr.f32.mxu0 0.0
      %1230 = vmatmul.mubr.f32.gmra.mrb[0].mxu0 %v1163
      %v1231 = vpop.f32.mrb[0].mxu0
      %v1232 = vadd.f32 0.0, %v1231
      %v1233 = vpop.f32.mrb[0].mxu0
      %1234 = vdwg.mxu0
      %v1235 = vadd.f32 %v458, %v1232
      %v1236 = vxor.u32 %v1235, 2147483648
      %v1237 = vmul.f32 %v1236, 1.442695
      %v1238 = vpow.pop %v1237
      %v1239 = vadd.f32 %v1238, 1.0
      %v1240 = vrcp.pop %v1239
      %v1241 = vmul.f32 1.0, %v1240
      %v1242 = vtanh.pop %v1235
      %v1243 = vmul.f32 %v1241, %v1153
      %1245 = vrot.lane.b32.xlu0 %v1242, 80
      %v1246 = vpop.permute.xlu0 %1245
      %v1248 = vmul.f32 %v1241, %v1246
      %1250 = vrot.lane.b32.xlu0 %v1248, 16
      %v1251 = vpop.permute.xlu0 %1250
      %v1253 = vadd.f32 %v1243, %v1251
      %v1254 = vtanh.pop %v1253
      %1256 = vrot.lane.b32.xlu0 %v1254, 16
      %v1257 = vpop.permute.xlu0 %1256
      %v1259 = vmul.f32 %v1241, %v1257
      %v1260 = vtanh.pop %v1259
      %v1262 = vlaneseq
      %v1263 = vshrl.u32 %v1262, 7
      %v1264 = vsub.s32 0, %v1263
      %v1265 = vrot.slane %v309, %v1264
      %1268 = vrot.lane.b32.xlu0 %v1260, 96
      %v1269 = vpop.permute.xlu0 %1268
      %v1270 = vsel %vm461, %v1269, 0
      %1272 = vmatprep.subr.mxu0 0.0
      %1273 = vmatpush1.msra.mxu0 %v307
      %1274 = vmatprep.subr.mxu0 0.0
      %1275 = vmatpush1.msra.mxu0 %v308
      %1276 = vmatprep.subr.mxu0 0.0
      %1277 = vmatpush1.msra.mxu0 0.0
      %1278 = vmatprep.subr.mxu0 0.0
      %1279 = vmatpush1.msra.mxu0 0.0
      %1280 = vmatprep.subr.mxu0 0.0
      %1281 = vmatpush1.msra.mxu0 0.0
      %1282 = vmatprep.subr.mxu0 0.0
      %1283 = vmatpush1.msra.mxu0 0.0
      %1284 = vmatprep.subr.mxu0 0.0
      %1285 = vmatpush1.msra.mxu0 0.0
      %1286 = vmatprep.subr.mxu0 0.0
      %1287 = vmatpush1.msra.mxu0 0.0
      %1288 = vmatprep.subr.mxu0 0.0
      %1289 = vmatpush1.msra.mxu0 0.0
      %1290 = vmatprep.subr.mxu0 0.0
      %1291 = vmatpush1.msra.mxu0 0.0
      %1292 = vmatprep.subr.mxu0 0.0
      %1293 = vmatpush1.msra.mxu0 0.0
      %1294 = vmatprep.subr.mxu0 0.0
      %1295 = vmatpush1.msra.mxu0 0.0
      %1296 = vmatprep.subr.mxu0 0.0
      %1297 = vmatpush1.msra.mxu0 0.0
      %1298 = vmatprep.subr.mxu0 0.0
      %1299 = vmatpush1.msra.mxu0 0.0
      %1300 = vmatprep.subr.mxu0 0.0
      %1301 = vmatpush1.msra.mxu0 0.0
      %1302 = vmatprep.subr.mxu0 0.0
      %1303 = vmatpush1.msra.mxu0 0.0
      %1304 = vmatprep.subr.mxu0 0.0
      %1305 = vmatpush1.msra.mxu0 0.0
      %1306 = vmatprep.subr.mxu0 0.0
      %1307 = vmatpush1.msra.mxu0 0.0
      %1308 = vmatprep.subr.mxu0 0.0
      %1309 = vmatpush1.msra.mxu0 0.0
      %1310 = vmatprep.subr.mxu0 0.0
      %1311 = vmatpush1.msra.mxu0 0.0
      %1312 = vmatprep.subr.mxu0 0.0
      %1313 = vmatpush1.msra.mxu0 0.0
      %1314 = vmatprep.subr.mxu0 0.0
      %1315 = vmatpush1.msra.mxu0 0.0
      %1316 = vmatprep.subr.mxu0 0.0
      %1317 = vmatpush1.msra.mxu0 0.0
      %1318 = vmatprep.subr.mxu0 0.0
      %1319 = vmatpush1.msra.mxu0 0.0
      %1320 = vmatprep.subr.mxu0 0.0
      %1321 = vmatpush1.msra.mxu0 0.0
      %1322 = vmatprep.subr.mxu0 0.0
      %1323 = vmatpush1.msra.mxu0 0.0
      %1324 = vmatprep.subr.mxu0 0.0
      %1325 = vmatpush1.msra.mxu0 0.0
      %1326 = vmatprep.subr.mxu0 0.0
      %1327 = vmatpush1.msra.mxu0 0.0
      %1328 = vmatprep.subr.mxu0 0.0
      %1329 = vmatpush1.msra.mxu0 0.0
      %1330 = vmatprep.subr.mxu0 0.0
      %1331 = vmatpush1.msra.mxu0 0.0
      %1332 = vmatprep.subr.mxu0 0.0
      %1333 = vmatpush1.msra.mxu0 0.0
      %1334 = vmatprep.subr.mxu0 0.0
      %1335 = vmatpush1.msra.mxu0 0.0
      %1336 = vmatprep.mubr.f32.mxu0 0.0
      %1337 = vmatmul.mubr.f32.gmra.mrb[0].mxu0 %v1270
      %v1338 = vpop.f32.mrb[0].mxu0
      %v1339 = vadd.f32 %v1265, %v1338
      %v1340 = vpop.f32.mrb[0].mxu0
      %1341 = vdwg.mxu0
      %vm1342 = vcmp.gt.f32.partialorder %v1339, 0.0
      %v1343 = vmul.f32 %v1339, 0.01
      %v1344 = vsel %vm1342, %v1339, %v1343
      %v1346 = vlaneseq
      %v1347 = vshrl.u32 %v1346, 7
      %v1348 = vsub.s32 0, %v1347
      %v1349 = vrot.slane %v310, %v1348
      %v1351 = vmul.f32 %v1344, %v1349
      %vm1352 = vcmask 64512
      %v1353 = vsel %vm1352, %v1351, 0.0
      %1354 = vadd.xlane.f32.xlu0 %v1353
      %v1355 = vpop.xlane.xlu0 %1354
      %s1356 = sld [smem:[#allocation2]]
      %v1357 = vstv %s1356
      %v1358 = vadd.f32 %v1355, %v1357
      %vm1359 = vcmask 7168
      %1360 = vst.msk [vmem:[%s304] sm:$0xff] %vm1359, %v1358
      %p1361 = scmp.lt.s32.totalorder %s20, 1
      %s1362 = scalar_select %p1361, %s20, 1
      %s1363 = smul.addr %s1362, 8
      %s1364 = scalar_lea.vmem %s8, %s1363
      // Predicated region
      $region53: #{tpu_custom_call.1} parent=51 // pred_check
        %p1365 = pneg %p211
      $region54: #{tpu_custom_call.1} parent=51 // pred_check_branch
        %1367 = sbr.rel (%p1365) target = $region56
      $region55: #{tpu_custom_call.1} parent=51 // pred_region
        _
      $region56: #{tpu_custom_call.1} parent=51 // pred_fallthru
        _
    $region52: #{tpu_custom_call.1} parent=5 // pred_fallthru
      _
    %p1368 = scmp.le.s32.totalorder 2, %s15
    // Predicated region
    $region57: #{tpu_custom_call.1} parent=5 // pred_check
      %p1369 = pneg %p1368
    $region58: #{tpu_custom_call.1} parent=5 // pred_check_branch
      %1371 = sbr.rel (%p1369) target = $region60
    $region59: #{tpu_custom_call.1} parent=5 // pred_region
      %s1372 = ssub.s32 %s15, 2
      // Predicated region
      $region61: #{tpu_custom_call.1} parent=59 // pred_check
        %p1373 = pneg %p217
      $region62: #{tpu_custom_call.1} parent=59 // pred_check_branch
        %1375 = sbr.rel (%p1373) target = $region64
      $region63: #{tpu_custom_call.1} parent=59 // pred_region
        %p1376 = scmp.lt.s32.totalorder %s21, 1
        %s1377 = scalar_select %p1376, %s21, 1
        %s1378 = smul.addr %s1377, 8
        %s1379 = scalar_lea.vmem %s8, %s1378
      $region64: #{tpu_custom_call.1} parent=59 // pred_fallthru
        _
    $region60: #{tpu_custom_call.1} parent=5 // pred_fallthru
      _
  $region6: #{tpu_custom_call.1} parent=0 // loop_footer
    %s19 = sadd.s32 1, %s15
  $region7: #{tpu_custom_call.1} parent=0 // loop_footer_branch
    %14 = sbr.rel target = $region3
  $region8: #{tpu_custom_call.1} parent=0 // loop_exit
    _

</llo_original>
